<compile_context>
chip_gen: v7x
topology: tpu7x:2x2x1
jax: 0.10.0
libtpu: 0.0.40
codegen_flags: <defaults>
</compile_context>

<pallas_src>
import numpy as np
import jax
import jax.numpy as jnp
from jax.experimental import pallas as pl
from jax.experimental.pallas import tpu as pltpu


# ----------------------------- fused kernel ---------------------------------


def _block_kernel(cols_ref, wc_ref, bc_ref, p_ref, wm3_ref, bm3_ref,
                  wmd_ref, bmd_ref, wg_ref, bg_ref,
                  o_rgb_ref, o_t_ref, o_sh_ref):
    """One batch element of the full Block forward, (C, H*W) lane-dense layout."""
    f32 = jnp.float32
    C = o_rgb_ref.shape[1]

    def swapped(v, k):
        # Every element replaced by its spatial partner (symmetric 0/1 perm, MXU).
        return jnp.dot(v, p_ref[k], preferred_element_type=f32)

    def pool_up(v):
        # x1 = up2(maxpool2(v)), x2 = up4(maxpool4(v)), both at full resolution,
        # built as "partner swap + elementwise max" (pooled per sublane row).
        a1 = jnp.maximum(v, swapped(v, 0))     # max over adjacent column pairs
        x1 = jnp.maximum(a1, swapped(a1, 1))   # ... and row pairs  -> 2x2 block max
        a2 = jnp.maximum(x1, swapped(x1, 2))   # max over adjacent 2-col blocks
        x2 = jnp.maximum(a2, swapped(a2, 3))   # ... and 2-row blocks -> 4x4 block max
        return x1, x2

    def sigmoid(z):
        return 1.0 / (1.0 + jnp.exp(-z))

    # --- 3x (conv3x3 + ReLU) as ONE block-diagonal matmul --------------------
    feats = jnp.dot(wc_ref[...], cols_ref[0], preferred_element_type=f32)
    feats = jnp.maximum(feats + bc_ref[...], 0.0)             # (3C, HW) = [rgb; t; sh]

    # --- rgb / t / shared_fuse MSC branches share one joint pooling ----------
    x1, x2 = pool_up(feats)
    cat = jnp.concatenate([feats, x1, x2], axis=0)            # (9C, HW)
    msc3 = jnp.dot(wm3_ref[...], cat, preferred_element_type=f32) + bm3_ref[...]
    msc3 = jnp.maximum(msc3, 0.0)                              # (3C, HW)

    rgb, t, sh = feats[0:C], feats[C:2 * C], feats[2 * C:3 * C]
    rgb_m, t_m, sh_m = msc3[0:C], msc3[C:2 * C], msc3[2 * C:3 * C]

    # --- fuse stage: both 1x1 gate convs in one block-diag matmul ------------
    dr = rgb_m - sh_m
    dt = t_m - sh_m
    g_f = sigmoid(jnp.dot(wg_ref[0], jnp.concatenate([dr, dt], axis=0),
                          preferred_element_type=f32) + bg_ref[0])
    new_sh = sh + dr * g_f[0:C] + dt * g_f[C:2 * C]

    # --- shared_distribute MSC on new_sh --------------------------------------
    y1, y2 = pool_up(new_sh)
    cat_d = jnp.concatenate([new_sh, y1, y2], axis=0)          # (3C, HW)
    nsh_m = jnp.dot(wmd_ref[...], cat_d, preferred_element_type=f32) + bmd_ref[...]
    nsh_m = jnp.maximum(nsh_m, 0.0)

    # --- distribute stage ------------------------------------------------------
    dr2 = nsh_m - rgb_m
    dt2 = nsh_m - t_m
    g_d = sigmoid(jnp.dot(wg_ref[1], jnp.concatenate([dr2, dt2], axis=0),
                          preferred_element_type=f32) + bg_ref[1])

    o_rgb_ref[0] = rgb + dr2 * g_d[0:C]
    o_t_ref[0] = t + dt2 * g_d[C:2 * C]
    o_sh_ref[0] = new_sh


# ----------------------------- host-side helpers ------------------------------


def _swap_matrices(H, W):
    """Four symmetric 0/1 permutations of the flattened spatial axis: swap
    adjacent s-wide chunks within 2s-blocks along cols (s=1,2) and rows (s=1,2).
    Chained with elementwise max they realize 2x2 / 4x4 maxpool + nearest up."""
    HW = H * W
    r, c = np.divmod(np.arange(HW), W)

    def swap(step, along_cols):
        if along_cols:
            c2 = np.where((c // step) % 2 == 0, c + step, c - step)
            r2 = r
        else:
            r2 = np.where((r // step) % 2 == 0, r + step, r - step)
            c2 = c
        P = np.zeros((HW, HW), np.float32)
        P[np.arange(HW), r2 * W + c2] = 1.0
        return P

    mats = np.stack([swap(1, True), swap(1, False), swap(2, True), swap(2, False)])
    return jnp.asarray(mats, dtype=jnp.float32)   # exact 0/1, f32 for exact pooling


def _assemble_weights(params, C, K):
    """Fold per-branch weights into the block-structured matrices the kernel uses."""
    wc, bc = params["conv_w"], params["conv_b"]        # (3,C,K), (3,C)
    wm, bm = params["msc_w"], params["msc_b"]          # (4,C,3C), (4,C)
    wg, bg = params["gate_w"], params["gate_b"]        # (4,C,C), (4,C)

    # Block-diagonal conv weight: (3C, 3K), stacked cols are [rgb | t | shared].
    wc_bd = jnp.zeros((3 * C, 3 * K), jnp.float32)
    for m in range(3):
        wc_bd = wc_bd.at[m * C:(m + 1) * C, m * K:(m + 1) * K].set(wc[m])
    bc_s = bc.reshape(3 * C, 1)

    # Block-structured MSC weight for the three parallel branches: (3C, 9C).
    # cat layout in-kernel: [x_rgb;x_t;x_sh ; x1_rgb;x1_t;x1_sh ; x2_rgb;x2_t;x2_sh]
    wm3 = jnp.zeros((3 * C, 9 * C), jnp.float32)
    for m in range(3):
        for s in range(3):  # scale: x, x1, x2
            wm3 = wm3.at[m * C:(m + 1) * C,
                         s * 3 * C + m * C: s * 3 * C + (m + 1) * C].set(
                             wm[m, :, s * C:(s + 1) * C])
    bm3 = bm[:3].reshape(3 * C, 1)

    wmd = wm[3]                       # shared_distribute MSC 1x1
    bmd = bm[3].reshape(C, 1)

    # Gate block-diagonals: [0]=fuse (rgb, t), [1]=distribute (rgb, t).
    wg_bd = jnp.zeros((2, 2 * C, 2 * C), jnp.float32)
    bg_s = jnp.zeros((2, 2 * C, 1), jnp.float32)
    for p, (a, b) in enumerate(((0, 1), (2, 3))):
        wg_bd = wg_bd.at[p, 0:C, 0:C].set(wg[a])
        wg_bd = wg_bd.at[p, C:2 * C, C:2 * C].set(wg[b])
        bg_s = bg_s.at[p, 0:C, 0].set(bg[a])
        bg_s = bg_s.at[p, C:2 * C, 0].set(bg[b])
    return wc_bd, bc_s, wm3, bm3, wmd, bmd, wg_bd, bg_s


@jax.jit
def block_forward(params, RGB, T, shared):
    """first_block=False path.  NCHW float32 in / NCHW float32 out."""
    B, Cin, H, W = RGB.shape
    C = params["conv_w"].shape[1]
    HW = H * W
    K = 9 * Cin
    assert H % 4 == 0 and W % 4 == 0, "MSC pooling here assumes H, W divisible by 4"
    # TODO(synk): first_block=True branch (shared = zeros, no shared_conv /
    # shared_fuse_msc) is not exercised by this configuration.

    def im2col(x):  # (B, Cin, H, W) -> (B, 9*Cin, H*W), tap-major / cin-minor rows
        xp = jnp.pad(x.astype(jnp.float32), ((0, 0), (0, 0), (1, 1), (1, 1)))
        taps = [xp[:, :, dy:dy + H, dx:dx + W]
                for dy in range(3) for dx in range(3)]
        return jnp.stack(taps, axis=1).reshape(B, K, HW)
    # TODO(synk): at larger H*W, move im2col inside the kernel (9 shifted dots)
    # to avoid the 9x expanded HBM array; negligible at 16x16.

    cols = jnp.concatenate([im2col(RGB), im2col(T), im2col(shared)], axis=1)  # (B,3K,HW)
    pswap = _swap_matrices(H, W)                                              # (4,HW,HW)
    wc_bd, bc_s, wm3, bm3, wmd, bmd, wg_bd, bg_s = _assemble_weights(params, C, K)

    grid_spec = pltpu.PrefetchScalarGridSpec(
        num_scalar_prefetch=0,
        grid=(B,),
        in_specs=[
            pl.BlockSpec((1, 3 * K, HW), lambda i: (i, 0, 0)),      # im2col cols
            pl.BlockSpec((3 * C, 3 * K), lambda i: (0, 0)),         # conv block-diag W
            pl.BlockSpec((3 * C, 1), lambda i: (0, 0)),             # conv biases
            pl.BlockSpec((4, HW, HW), lambda i: (0, 0, 0)),         # swap perms
            pl.BlockSpec((3 * C, 9 * C), lambda i: (0, 0)),         # msc3 block W
            pl.BlockSpec((3 * C, 1), lambda i: (0, 0)),             # msc3 biases
            pl.BlockSpec((C, 3 * C), lambda i: (0, 0)),             # distribute-msc W
            pl.BlockSpec((C, 1), lambda i: (0, 0)),                 # distribute-msc b
            pl.BlockSpec((2, 2 * C, 2 * C), lambda i: (0, 0, 0)),   # gate block-diag W
            pl.BlockSpec((2, 2 * C, 1), lambda i: (0, 0, 0)),       # gate biases
        ],
        out_specs=[
            pl.BlockSpec((1, C, HW), lambda i: (i, 0, 0)),
            pl.BlockSpec((1, C, HW), lambda i: (i, 0, 0)),
            pl.BlockSpec((1, C, HW), lambda i: (i, 0, 0)),
        ],
    )
    new_rgb, new_t, new_sh = pl.pallas_call(
        _block_kernel,
        out_shape=tuple(jax.ShapeDtypeStruct((B, C, HW), jnp.float32)
                        for _ in range(3)),
        grid_spec=grid_spec,
        compiler_params=pltpu.CompilerParams(dimension_semantics=("parallel",)),
    )(cols, wc_bd, bc_s, pswap, wm3, bm3, wmd, bmd, wg_bd, bg_s)

    shape = (B, C, H, W)
    return new_rgb.reshape(shape), new_t.reshape(shape), new_sh.reshape(shape)


def init_params(key, in_channels, C):
    shapes = {
        "conv_w": (3, C, 9 * in_channels), "conv_b": (3, C),   # [rgb, t, shared]
        "msc_w": (4, C, 3 * C), "msc_b": (4, C),               # [rgb, t, sh_fuse, sh_dist]
        "gate_w": (4, C, C), "gate_b": (4, C),                 # [rgb_f, t_f, rgb_d, t_d]
    }
    keys = jax.random.split(key, len(shapes))
    params = {}
    for (name, shape), k in zip(shapes.items(), keys):
        scale = 0.2 if name.endswith("_w") else 0.05
        params[name] = scale * jax.random.normal(k, shape, jnp.float32)
    return params


# -------------------------- pure-JAX reference --------------------------------


def _ref_block(params, RGB, T, shared):
    B, Cin, H, W = RGB.shape
    C = params["conv_w"].shape[1]
    f32 = jnp.float32

    def conv3(x, w, b):
        w4 = w.reshape(C, 3, 3, Cin).transpose(0, 3, 1, 2)   # (C, Cin, 3, 3) OIHW
        y = jax.lax.conv_general_dilated(
            x.astype(f32), w4, (1, 1), "SAME",
            dimension_numbers=("NCHW", "OIHW", "NCHW"))
        return jnp.maximum(y + b[None, :, None, None], 0.0)

    def msc(x, w, b):
        def pool(a, k):
            return jax.lax.reduce_window(a, -jnp.inf, jax.lax.max,
                                         (1, 1, k, k), (1, 1, k, k), "VALID")
        up = lambda a, k: jnp.repeat(jnp.repeat(a, k, axis=2), k, axis=3)
        cat = jnp.concatenate([x, up(pool(x, 2), 2), up(pool(x, 4), 4)], axis=1)
        y = jnp.einsum("oc,bchw->bohw", w, cat) + b[None, :, None, None]
        return jnp.maximum(y, 0.0)

    def gate(d, w, b):
        z = jnp.einsum("oc,bchw->bohw", w, d) + b[None, :, None, None]
        return 1.0 / (1.0 + jnp.exp(-z))

    rgb = conv3(RGB, params["conv_w"][0], params["conv_b"][0])
    t = conv3(T, params["conv_w"][1], params["conv_b"][1])
    sh = conv3(shared, params["conv_w"][2], params["conv_b"][2])

    rgb_m = msc(rgb, params["msc_w"][0], params["msc_b"][0])
    t_m = msc(t, params["msc_w"][1], params["msc_b"][1])
    sh_m = msc(sh, params["msc_w"][2], params["msc_b"][2])

    dr, dt = rgb_m - sh_m, t_m - sh_m
    new_sh = (sh + dr * gate(dr, params["gate_w"][0], params["gate_b"][0])
                 + dt * gate(dt, params["gate_w"][1], params["gate_b"][1]))
    nsh_m = msc(new_sh, params["msc_w"][3], params["msc_b"][3])
    dr2, dt2 = nsh_m - rgb_m, nsh_m - t_m
    new_rgb = rgb + dr2 * gate(dr2, params["gate_w"][2], params["gate_b"][2])
    new_t = t + dt2 * gate(dt2, params["gate_w"][3], params["gate_b"][3])
    return new_rgb, new_t, new_sh


if __name__ == "__main__":
    B, Cin, H, W = 2, 4, 16, 16
    C = 8  # cfg = [8]
    key = jax.random.PRNGKey(0)
    kp, kr, kt, ks = jax.random.split(key, 4)
    params = init_params(kp, Cin, C)
    RGB = jax.random.normal(kr, (B, Cin, H, W), jnp.float32)
    T = jax.random.normal(kt, (B, Cin, H, W), jnp.float32)
    shared = jax.random.normal(ks, (B, Cin, H, W), jnp.float32)

    out = block_forward(params, RGB, T, shared)
    out = jax.block_until_ready(out)

    ref = _ref_block(params, RGB, T, shared)
    for o, r in zip(out, ref):
        assert o.shape == (B, C, H, W)
        np.testing.assert_allclose(np.asarray(o), np.asarray(r),
                                   rtol=5e-2, atol=5e-2)

    print("KERNEL_OK")
</pallas_src>

<mosaic_0001>
module attributes {stable_mosaic.version = 11 : i64} {
  func.func @_block_kernel(%arg0: i32, %arg1: memref<1x108x256xf32, #tpu.memory_space<vmem>>, %arg2: memref<24x108xf32, #tpu.memory_space<vmem>>, %arg3: memref<24x1xf32, #tpu.memory_space<vmem>>, %arg4: memref<4x256x256xf32, #tpu.memory_space<vmem>>, %arg5: memref<24x72xf32, #tpu.memory_space<vmem>>, %arg6: memref<24x1xf32, #tpu.memory_space<vmem>>, %arg7: memref<8x24xf32, #tpu.memory_space<vmem>>, %arg8: memref<8x1xf32, #tpu.memory_space<vmem>>, %arg9: memref<2x16x16xf32, #tpu.memory_space<vmem>>, %arg10: memref<2x16x1xf32, #tpu.memory_space<vmem>>, %arg11: memref<1x8x256xf32, #tpu.memory_space<vmem>>, %arg12: memref<1x8x256xf32, #tpu.memory_space<vmem>>, %arg13: memref<1x8x256xf32, #tpu.memory_space<vmem>>) attributes {dimension_semantics = [#tpu.dimension_semantics<parallel>], iteration_bounds = array<i64: 2>, scalar_prefetch = 0 : i64, scratch_operands = 0 : i64, tpu.core_type = #tpu.core_type<tc>, window_params = [{transform_indices = @transform_0, window_bounds = array<i64: 1, 108, 256>}, {pipeline_mode = #tpu.pipeline_mode<synchronous>, transform_indices = @transform_1, window_bounds = array<i64: 24, 108>}, {pipeline_mode = #tpu.pipeline_mode<synchronous>, transform_indices = @transform_2, window_bounds = array<i64: 24, 1>}, {pipeline_mode = #tpu.pipeline_mode<synchronous>, transform_indices = @transform_3, window_bounds = array<i64: 4, 256, 256>}, {pipeline_mode = #tpu.pipeline_mode<synchronous>, transform_indices = @transform_4, window_bounds = array<i64: 24, 72>}, {pipeline_mode = #tpu.pipeline_mode<synchronous>, transform_indices = @transform_5, window_bounds = array<i64: 24, 1>}, {pipeline_mode = #tpu.pipeline_mode<synchronous>, transform_indices = @transform_6, window_bounds = array<i64: 8, 24>}, {pipeline_mode = #tpu.pipeline_mode<synchronous>, transform_indices = @transform_7, window_bounds = array<i64: 8, 1>}, {pipeline_mode = #tpu.pipeline_mode<synchronous>, transform_indices = @transform_8, window_bounds = array<i64: 2, 16, 16>}, {pipeline_mode = #tpu.pipeline_mode<synchronous>, transform_indices = @transform_9, window_bounds = array<i64: 2, 16, 1>}, {transform_indices = @transform_10, window_bounds = array<i64: 1, 8, 256>}, {transform_indices = @transform_11, window_bounds = array<i64: 1, 8, 256>}, {transform_indices = @transform_12, window_bounds = array<i64: 1, 8, 256>}]} {
    %c0 = arith.constant 0 : index
    %c0_0 = arith.constant 0 : index
    %0 = vector.load %arg2[%c0, %c0_0] : memref<24x108xf32, #tpu.memory_space<vmem>>, vector<24x108xf32>
    %c0_1 = arith.constant 0 : index
    %c0_2 = arith.constant 0 : index
    %c0_3 = arith.constant 0 : index
    %1 = vector.load %arg1[%c0_1, %c0_2, %c0_3] : memref<1x108x256xf32, #tpu.memory_space<vmem>>, vector<1x108x256xf32>
    %2 = vector.shape_cast %1 : vector<1x108x256xf32> to vector<108x256xf32>
    %cst = arith.constant dense<0.000000e+00> : vector<24x256xf32>
    %3 = tpu.matmul %0, %2, %cst {dimension_numbers = #tpu.dot_dimension_numbers<[1], [0], [0], [1], [0, 0, 1, 1], [], []>} : vector<24x108xf32>, vector<108x256xf32>, vector<24x256xf32> -> vector<24x256xf32>
    %c0_4 = arith.constant 0 : index
    %c0_5 = arith.constant 0 : index
    %4 = vector.load %arg3[%c0_4, %c0_5] : memref<24x1xf32, #tpu.memory_space<vmem>>, vector<24x1xf32>
    %5 = vector.broadcast %4 : vector<24x1xf32> to vector<24x256xf32>
    %6 = arith.addf %3, %5 : vector<24x256xf32>
    %cst_6 = arith.constant 0.000000e+00 : f32
    %7 = vector.broadcast %cst_6 : f32 to vector<24x256xf32>
    %8 = arith.maximumf %6, %7 : vector<24x256xf32>
    %c0_7 = arith.constant 0 : index
    %c0_8 = arith.constant 0 : index
    %c0_9 = arith.constant 0 : index
    %9 = vector.load %arg4[%c0_7, %c0_8, %c0_9] : memref<4x256x256xf32, #tpu.memory_space<vmem>>, vector<1x256x256xf32>
    %10 = vector.shape_cast %9 : vector<1x256x256xf32> to vector<256x256xf32>
    %cst_10 = arith.constant dense<0.000000e+00> : vector<24x256xf32>
    %11 = tpu.matmul %8, %10, %cst_10 {dimension_numbers = #tpu.dot_dimension_numbers<[1], [0], [0], [1], [0, 0, 1, 1], [], []>} : vector<24x256xf32>, vector<256x256xf32>, vector<24x256xf32> -> vector<24x256xf32>
    %12 = arith.maximumf %8, %11 : vector<24x256xf32>
    %c1 = arith.constant 1 : index
    %c0_11 = arith.constant 0 : index
    %c0_12 = arith.constant 0 : index
    %13 = vector.load %arg4[%c1, %c0_11, %c0_12] : memref<4x256x256xf32, #tpu.memory_space<vmem>>, vector<1x256x256xf32>
    %14 = vector.shape_cast %13 : vector<1x256x256xf32> to vector<256x256xf32>
    %cst_13 = arith.constant dense<0.000000e+00> : vector<24x256xf32>
    %15 = tpu.matmul %12, %14, %cst_13 {dimension_numbers = #tpu.dot_dimension_numbers<[1], [0], [0], [1], [0, 0, 1, 1], [], []>} : vector<24x256xf32>, vector<256x256xf32>, vector<24x256xf32> -> vector<24x256xf32>
    %16 = arith.maximumf %12, %15 : vector<24x256xf32>
    %c2 = arith.constant 2 : index
    %c0_14 = arith.constant 0 : index
    %c0_15 = arith.constant 0 : index
    %17 = vector.load %arg4[%c2, %c0_14, %c0_15] : memref<4x256x256xf32, #tpu.memory_space<vmem>>, vector<1x256x256xf32>
    %18 = vector.shape_cast %17 : vector<1x256x256xf32> to vector<256x256xf32>
    %cst_16 = arith.constant dense<0.000000e+00> : vector<24x256xf32>
    %19 = tpu.matmul %16, %18, %cst_16 {dimension_numbers = #tpu.dot_dimension_numbers<[1], [0], [0], [1], [0, 0, 1, 1], [], []>} : vector<24x256xf32>, vector<256x256xf32>, vector<24x256xf32> -> vector<24x256xf32>
    %20 = arith.maximumf %16, %19 : vector<24x256xf32>
    %c3 = arith.constant 3 : index
    %c0_17 = arith.constant 0 : index
    %c0_18 = arith.constant 0 : index
    %21 = vector.load %arg4[%c3, %c0_17, %c0_18] : memref<4x256x256xf32, #tpu.memory_space<vmem>>, vector<1x256x256xf32>
    %22 = vector.shape_cast %21 : vector<1x256x256xf32> to vector<256x256xf32>
    %cst_19 = arith.constant dense<0.000000e+00> : vector<24x256xf32>
    %23 = tpu.matmul %20, %22, %cst_19 {dimension_numbers = #tpu.dot_dimension_numbers<[1], [0], [0], [1], [0, 0, 1, 1], [], []>} : vector<24x256xf32>, vector<256x256xf32>, vector<24x256xf32> -> vector<24x256xf32>
    %24 = arith.maximumf %20, %23 : vector<24x256xf32>
    %25 = tpu.concatenate %8, %16, %24 in 0 : vector<24x256xf32>, vector<24x256xf32>, vector<24x256xf32> -> vector<72x256xf32>
    %c0_20 = arith.constant 0 : index
    %c0_21 = arith.constant 0 : index
    %26 = vector.load %arg5[%c0_20, %c0_21] : memref<24x72xf32, #tpu.memory_space<vmem>>, vector<24x72xf32>
    %cst_22 = arith.constant dense<0.000000e+00> : vector<24x256xf32>
    %27 = tpu.matmul %26, %25, %cst_22 {dimension_numbers = #tpu.dot_dimension_numbers<[1], [0], [0], [1], [0, 0, 1, 1], [], []>} : vector<24x72xf32>, vector<72x256xf32>, vector<24x256xf32> -> vector<24x256xf32>
    %c0_23 = arith.constant 0 : index
    %c0_24 = arith.constant 0 : index
    %28 = vector.load %arg6[%c0_23, %c0_24] : memref<24x1xf32, #tpu.memory_space<vmem>>, vector<24x1xf32>
    %29 = vector.broadcast %28 : vector<24x1xf32> to vector<24x256xf32>
    %30 = arith.addf %27, %29 : vector<24x256xf32>
    %cst_25 = arith.constant 0.000000e+00 : f32
    %31 = vector.broadcast %cst_25 : f32 to vector<24x256xf32>
    %32 = arith.maximumf %30, %31 : vector<24x256xf32>
    %33 = vector.extract_strided_slice %8 {offsets = [0, 0], sizes = [8, 256], strides = [1, 1]} : vector<24x256xf32> to vector<8x256xf32>
    %34 = vector.extract_strided_slice %8 {offsets = [8, 0], sizes = [8, 256], strides = [1, 1]} : vector<24x256xf32> to vector<8x256xf32>
    %35 = vector.extract_strided_slice %8 {offsets = [16, 0], sizes = [8, 256], strides = [1, 1]} : vector<24x256xf32> to vector<8x256xf32>
    %36 = vector.extract_strided_slice %32 {offsets = [0, 0], sizes = [8, 256], strides = [1, 1]} : vector<24x256xf32> to vector<8x256xf32>
    %37 = vector.extract_strided_slice %32 {offsets = [8, 0], sizes = [8, 256], strides = [1, 1]} : vector<24x256xf32> to vector<8x256xf32>
    %38 = vector.extract_strided_slice %32 {offsets = [16, 0], sizes = [8, 256], strides = [1, 1]} : vector<24x256xf32> to vector<8x256xf32>
    %39 = arith.subf %36, %38 : vector<8x256xf32>
    %40 = arith.subf %37, %38 : vector<8x256xf32>
    %c0_26 = arith.constant 0 : index
    %c0_27 = arith.constant 0 : index
    %c0_28 = arith.constant 0 : index
    %41 = vector.load %arg9[%c0_26, %c0_27, %c0_28] : memref<2x16x16xf32, #tpu.memory_space<vmem>>, vector<1x16x16xf32>
    %42 = vector.shape_cast %41 : vector<1x16x16xf32> to vector<16x16xf32>
    %43 = tpu.concatenate %39, %40 in 0 : vector<8x256xf32>, vector<8x256xf32> -> vector<16x256xf32>
    %cst_29 = arith.constant dense<0.000000e+00> : vector<16x256xf32>
    %44 = tpu.matmul %42, %43, %cst_29 {dimension_numbers = #tpu.dot_dimension_numbers<[1], [0], [0], [1], [0, 0, 1, 1], [], []>} : vector<16x16xf32>, vector<16x256xf32>, vector<16x256xf32> -> vector<16x256xf32>
    %c0_30 = arith.constant 0 : index
    %c0_31 = arith.constant 0 : index
    %c0_32 = arith.constant 0 : index
    %45 = vector.load %arg10[%c0_30, %c0_31, %c0_32] : memref<2x16x1xf32, #tpu.memory_space<vmem>>, vector<1x16x1xf32>
    %46 = vector.shape_cast %45 : vector<1x16x1xf32> to vector<16x1xf32>
    %47 = vector.broadcast %46 : vector<16x1xf32> to vector<16x256xf32>
    %48 = arith.addf %44, %47 : vector<16x256xf32>
    %cst_33 = arith.constant 0.000000e+00 : f32
    %49 = vector.broadcast %cst_33 : f32 to vector<16x256xf32>
    %50 = arith.subf %49, %48 : vector<16x256xf32>
    %51 = math.exp %50 : vector<16x256xf32>
    %cst_34 = arith.constant 1.000000e+00 : f32
    %52 = vector.broadcast %cst_34 : f32 to vector<16x256xf32>
    %53 = arith.addf %52, %51 : vector<16x256xf32>
    %cst_35 = arith.constant 1.000000e+00 : f32
    %54 = vector.broadcast %cst_35 : f32 to vector<16x256xf32>
    %55 = arith.divf %54, %53 : vector<16x256xf32>
    %56 = vector.extract_strided_slice %55 {offsets = [0, 0], sizes = [8, 256], strides = [1, 1]} : vector<16x256xf32> to vector<8x256xf32>
    %57 = arith.mulf %39, %56 : vector<8x256xf32>
    %58 = arith.addf %35, %57 : vector<8x256xf32>
    %59 = vector.extract_strided_slice %55 {offsets = [8, 0], sizes = [8, 256], strides = [1, 1]} : vector<16x256xf32> to vector<8x256xf32>
    %60 = arith.mulf %40, %59 : vector<8x256xf32>
    %61 = arith.addf %58, %60 : vector<8x256xf32>
    %c0_36 = arith.constant 0 : index
    %c0_37 = arith.constant 0 : index
    %c0_38 = arith.constant 0 : index
    %62 = vector.load %arg4[%c0_36, %c0_37, %c0_38] : memref<4x256x256xf32, #tpu.memory_space<vmem>>, vector<1x256x256xf32>
    %63 = vector.shape_cast %62 : vector<1x256x256xf32> to vector<256x256xf32>
    %cst_39 = arith.constant dense<0.000000e+00> : vector<8x256xf32>
    %64 = tpu.matmul %61, %63, %cst_39 {dimension_numbers = #tpu.dot_dimension_numbers<[1], [0], [0], [1], [0, 0, 1, 1], [], []>} : vector<8x256xf32>, vector<256x256xf32>, vector<8x256xf32> -> vector<8x256xf32>
    %65 = arith.maximumf %61, %64 : vector<8x256xf32>
    %c1_40 = arith.constant 1 : index
    %c0_41 = arith.constant 0 : index
    %c0_42 = arith.constant 0 : index
    %66 = vector.load %arg4[%c1_40, %c0_41, %c0_42] : memref<4x256x256xf32, #tpu.memory_space<vmem>>, vector<1x256x256xf32>
    %67 = vector.shape_cast %66 : vector<1x256x256xf32> to vector<256x256xf32>
    %cst_43 = arith.constant dense<0.000000e+00> : vector<8x256xf32>
    %68 = tpu.matmul %65, %67, %cst_43 {dimension_numbers = #tpu.dot_dimension_numbers<[1], [0], [0], [1], [0, 0, 1, 1], [], []>} : vector<8x256xf32>, vector<256x256xf32>, vector<8x256xf32> -> vector<8x256xf32>
    %69 = arith.maximumf %65, %68 : vector<8x256xf32>
    %c2_44 = arith.constant 2 : index
    %c0_45 = arith.constant 0 : index
    %c0_46 = arith.constant 0 : index
    %70 = vector.load %arg4[%c2_44, %c0_45, %c0_46] : memref<4x256x256xf32, #tpu.memory_space<vmem>>, vector<1x256x256xf32>
    %71 = vector.shape_cast %70 : vector<1x256x256xf32> to vector<256x256xf32>
    %cst_47 = arith.constant dense<0.000000e+00> : vector<8x256xf32>
    %72 = tpu.matmul %69, %71, %cst_47 {dimension_numbers = #tpu.dot_dimension_numbers<[1], [0], [0], [1], [0, 0, 1, 1], [], []>} : vector<8x256xf32>, vector<256x256xf32>, vector<8x256xf32> -> vector<8x256xf32>
    %73 = arith.maximumf %69, %72 : vector<8x256xf32>
    %c3_48 = arith.constant 3 : index
    %c0_49 = arith.constant 0 : index
    %c0_50 = arith.constant 0 : index
    %74 = vector.load %arg4[%c3_48, %c0_49, %c0_50] : memref<4x256x256xf32, #tpu.memory_space<vmem>>, vector<1x256x256xf32>
    %75 = vector.shape_cast %74 : vector<1x256x256xf32> to vector<256x256xf32>
    %cst_51 = arith.constant dense<0.000000e+00> : vector<8x256xf32>
    %76 = tpu.matmul %73, %75, %cst_51 {dimension_numbers = #tpu.dot_dimension_numbers<[1], [0], [0], [1], [0, 0, 1, 1], [], []>} : vector<8x256xf32>, vector<256x256xf32>, vector<8x256xf32> -> vector<8x256xf32>
    %77 = arith.maximumf %73, %76 : vector<8x256xf32>
    %78 = tpu.concatenate %61, %69, %77 in 0 : vector<8x256xf32>, vector<8x256xf32>, vector<8x256xf32> -> vector<24x256xf32>
    %c0_52 = arith.constant 0 : index
    %c0_53 = arith.constant 0 : index
    %79 = vector.load %arg7[%c0_52, %c0_53] : memref<8x24xf32, #tpu.memory_space<vmem>>, vector<8x24xf32>
    %cst_54 = arith.constant dense<0.000000e+00> : vector<8x256xf32>
    %80 = tpu.matmul %79, %78, %cst_54 {dimension_numbers = #tpu.dot_dimension_numbers<[1], [0], [0], [1], [0, 0, 1, 1], [], []>} : vector<8x24xf32>, vector<24x256xf32>, vector<8x256xf32> -> vector<8x256xf32>
    %c0_55 = arith.constant 0 : index
    %c0_56 = arith.constant 0 : index
    %81 = vector.load %arg8[%c0_55, %c0_56] : memref<8x1xf32, #tpu.memory_space<vmem>>, vector<8x1xf32>
    %82 = vector.broadcast %81 : vector<8x1xf32> to vector<8x256xf32>
    %83 = arith.addf %80, %82 : vector<8x256xf32>
    %cst_57 = arith.constant 0.000000e+00 : f32
    %84 = vector.broadcast %cst_57 : f32 to vector<8x256xf32>
    %85 = arith.maximumf %83, %84 : vector<8x256xf32>
    %86 = arith.subf %85, %36 : vector<8x256xf32>
    %87 = arith.subf %85, %37 : vector<8x256xf32>
    %c1_58 = arith.constant 1 : index
    %c0_59 = arith.constant 0 : index
    %c0_60 = arith.constant 0 : index
    %88 = vector.load %arg9[%c1_58, %c0_59, %c0_60] : memref<2x16x16xf32, #tpu.memory_space<vmem>>, vector<1x16x16xf32>
    %89 = vector.shape_cast %88 : vector<1x16x16xf32> to vector<16x16xf32>
    %90 = tpu.concatenate %86, %87 in 0 : vector<8x256xf32>, vector<8x256xf32> -> vector<16x256xf32>
    %cst_61 = arith.constant dense<0.000000e+00> : vector<16x256xf32>
    %91 = tpu.matmul %89, %90, %cst_61 {dimension_numbers = #tpu.dot_dimension_numbers<[1], [0], [0], [1], [0, 0, 1, 1], [], []>} : vector<16x16xf32>, vector<16x256xf32>, vector<16x256xf32> -> vector<16x256xf32>
    %c1_62 = arith.constant 1 : index
    %c0_63 = arith.constant 0 : index
    %c0_64 = arith.constant 0 : index
    %92 = vector.load %arg10[%c1_62, %c0_63, %c0_64] : memref<2x16x1xf32, #tpu.memory_space<vmem>>, vector<1x16x1xf32>
    %93 = vector.shape_cast %92 : vector<1x16x1xf32> to vector<16x1xf32>
    %94 = vector.broadcast %93 : vector<16x1xf32> to vector<16x256xf32>
    %95 = arith.addf %91, %94 : vector<16x256xf32>
    %cst_65 = arith.constant 0.000000e+00 : f32
    %96 = vector.broadcast %cst_65 : f32 to vector<16x256xf32>
    %97 = arith.subf %96, %95 : vector<16x256xf32>
    %98 = math.exp %97 : vector<16x256xf32>
    %cst_66 = arith.constant 1.000000e+00 : f32
    %99 = vector.broadcast %cst_66 : f32 to vector<16x256xf32>
    %100 = arith.addf %99, %98 : vector<16x256xf32>
    %cst_67 = arith.constant 1.000000e+00 : f32
    %101 = vector.broadcast %cst_67 : f32 to vector<16x256xf32>
    %102 = arith.divf %101, %100 : vector<16x256xf32>
    %103 = vector.extract_strided_slice %102 {offsets = [0, 0], sizes = [8, 256], strides = [1, 1]} : vector<16x256xf32> to vector<8x256xf32>
    %104 = arith.mulf %86, %103 : vector<8x256xf32>
    %105 = arith.addf %33, %104 : vector<8x256xf32>
    %c0_68 = arith.constant 0 : index
    %c0_69 = arith.constant 0 : index
    %c0_70 = arith.constant 0 : index
    %106 = vector.load %arg11[%c0_68, %c0_69, %c0_70] : memref<1x8x256xf32, #tpu.memory_space<vmem>>, vector<1x8x256xf32>
    %107 = vector.shape_cast %106 : vector<1x8x256xf32> to vector<8x256xf32>
    %108 = vector.shape_cast %105 : vector<8x256xf32> to vector<1x8x256xf32>
    tpu.vector_store %arg11[%c0_68, %c0_69, %c0_70], %108 {strides = array<i32>} : memref<1x8x256xf32, #tpu.memory_space<vmem>>, vector<1x8x256xf32>,
    %109 = vector.extract_strided_slice %102 {offsets = [8, 0], sizes = [8, 256], strides = [1, 1]} : vector<16x256xf32> to vector<8x256xf32>
    %110 = arith.mulf %87, %109 : vector<8x256xf32>
    %111 = arith.addf %34, %110 : vector<8x256xf32>
    %c0_71 = arith.constant 0 : index
    %c0_72 = arith.constant 0 : index
    %c0_73 = arith.constant 0 : index
    %112 = vector.load %arg12[%c0_71, %c0_72, %c0_73] : memref<1x8x256xf32, #tpu.memory_space<vmem>>, vector<1x8x256xf32>
    %113 = vector.shape_cast %112 : vector<1x8x256xf32> to vector<8x256xf32>
    %114 = vector.shape_cast %111 : vector<8x256xf32> to vector<1x8x256xf32>
    tpu.vector_store %arg12[%c0_71, %c0_72, %c0_73], %114 {strides = array<i32>} : memref<1x8x256xf32, #tpu.memory_space<vmem>>, vector<1x8x256xf32>,
    %c0_74 = arith.constant 0 : index
    %c0_75 = arith.constant 0 : index
    %c0_76 = arith.constant 0 : index
    %115 = vector.load %arg13[%c0_74, %c0_75, %c0_76] : memref<1x8x256xf32, #tpu.memory_space<vmem>>, vector<1x8x256xf32>
    %116 = vector.shape_cast %115 : vector<1x8x256xf32> to vector<8x256xf32>
    %117 = vector.shape_cast %61 : vector<8x256xf32> to vector<1x8x256xf32>
    tpu.vector_store %arg13[%c0_74, %c0_75, %c0_76], %117 {strides = array<i32>} : memref<1x8x256xf32, #tpu.memory_space<vmem>>, vector<1x8x256xf32>,
    return
  }
  func.func @transform_0(%arg0: i32) -> (i32, i32, i32) {
    %c0_i32 = arith.constant 0 : i32
    %c0_i32_0 = arith.constant 0 : i32
    %c0_i32_1 = arith.constant 0 : i32
    return %arg0, %c0_i32, %c0_i32_0 : i32, i32, i32
  }
  func.func @transform_1(%arg0: i32) -> (i32, i32) {
    %c0_i32 = arith.constant 0 : i32
    %c0_i32_0 = arith.constant 0 : i32
    %c0_i32_1 = arith.constant 0 : i32
    return %c0_i32, %c0_i32_0 : i32, i32
  }
  func.func @transform_2(%arg0: i32) -> (i32, i32) {
    %c0_i32 = arith.constant 0 : i32
    %c0_i32_0 = arith.constant 0 : i32
    %c0_i32_1 = arith.constant 0 : i32
    return %c0_i32, %c0_i32_0 : i32, i32
  }
  func.func @transform_3(%arg0: i32) -> (i32, i32, i32) {
    %c0_i32 = arith.constant 0 : i32
    %c0_i32_0 = arith.constant 0 : i32
    %c0_i32_1 = arith.constant 0 : i32
    %c0_i32_2 = arith.constant 0 : i32
    return %c0_i32, %c0_i32_0, %c0_i32_1 : i32, i32, i32
  }
  func.func @transform_4(%arg0: i32) -> (i32, i32) {
    %c0_i32 = arith.constant 0 : i32
    %c0_i32_0 = arith.constant 0 : i32
    %c0_i32_1 = arith.constant 0 : i32
    return %c0_i32, %c0_i32_0 : i32, i32
  }
  func.func @transform_5(%arg0: i32) -> (i32, i32) {
    %c0_i32 = arith.constant 0 : i32
    %c0_i32_0 = arith.constant 0 : i32
    %c0_i32_1 = arith.constant 0 : i32
    return %c0_i32, %c0_i32_0 : i32, i32
  }
  func.func @transform_6(%arg0: i32) -> (i32, i32) {
    %c0_i32 = arith.constant 0 : i32
    %c0_i32_0 = arith.constant 0 : i32
    %c0_i32_1 = arith.constant 0 : i32
    return %c0_i32, %c0_i32_0 : i32, i32
  }
  func.func @transform_7(%arg0: i32) -> (i32, i32) {
    %c0_i32 = arith.constant 0 : i32
    %c0_i32_0 = arith.constant 0 : i32
    %c0_i32_1 = arith.constant 0 : i32
    return %c0_i32, %c0_i32_0 : i32, i32
  }
  func.func @transform_8(%arg0: i32) -> (i32, i32, i32) {
    %c0_i32 = arith.constant 0 : i32
    %c0_i32_0 = arith.constant 0 : i32
    %c0_i32_1 = arith.constant 0 : i32
    %c0_i32_2 = arith.constant 0 : i32
    return %c0_i32, %c0_i32_0, %c0_i32_1 : i32, i32, i32
  }
  func.func @transform_9(%arg0: i32) -> (i32, i32, i32) {
    %c0_i32 = arith.constant 0 : i32
    %c0_i32_0 = arith.constant 0 : i32
    %c0_i32_1 = arith.constant 0 : i32
    %c0_i32_2 = arith.constant 0 : i32
    return %c0_i32, %c0_i32_0, %c0_i32_1 : i32, i32, i32
  }
  func.func @transform_10(%arg0: i32) -> (i32, i32, i32) {
    %c0_i32 = arith.constant 0 : i32
    %c0_i32_0 = arith.constant 0 : i32
    %c0_i32_1 = arith.constant 0 : i32
    return %arg0, %c0_i32, %c0_i32_0 : i32, i32, i32
  }
  func.func @transform_11(%arg0: i32) -> (i32, i32, i32) {
    %c0_i32 = arith.constant 0 : i32
    %c0_i32_0 = arith.constant 0 : i32
    %c0_i32_1 = arith.constant 0 : i32
    return %arg0, %c0_i32, %c0_i32_0 : i32, i32, i32
  }
  func.func @transform_12(%arg0: i32) -> (i32, i32, i32) {
    %c0_i32 = arith.constant 0 : i32
    %c0_i32_0 = arith.constant 0 : i32
    %c0_i32_1 = arith.constant 0 : i32
    return %arg0, %c0_i32, %c0_i32_0 : i32, i32, i32
  }
}

</mosaic_0001>

<llo_original>
// kernel: block_forward.1
$region0: #{block_forward.1}
  #allocation0 [shape = 'u32[]', space=smem, size = 0x4, offset = 0x4, fixed_abs, tag = 'smem constant byte address 0x4 - core index']
  #allocation1 [shape = 'u32[144,128]{1,0:T(1,128)}', space=vmem, size = 0x12000, scoped, tag = 'internal scratch']
  %s0 = inlined_call_operand.vmem [shape: f32[2,108,256], index: 0, kind: input, shape index: {}]
  %s1 = inlined_call_operand.vmem [shape: f32[24,108], index: 1, kind: input, shape index: {}]
  %s2 = inlined_call_operand.vmem [shape: f32[24,1], index: 2, kind: input, shape index: {}]
  %s3 = inlined_call_operand.vmem [shape: f32[4,256,256], index: 3, kind: input, shape index: {}]
  %s4 = inlined_call_operand.vmem [shape: f32[24,72], index: 4, kind: input, shape index: {}]
  %s5 = inlined_call_operand.vmem [shape: f32[24,1], index: 5, kind: input, shape index: {}]
  %s6 = inlined_call_operand.vmem [shape: f32[8,24], index: 6, kind: input, shape index: {}]
  %s7 = inlined_call_operand.vmem [shape: f32[8,1], index: 7, kind: input, shape index: {}]
  %s8 = inlined_call_operand.vmem [shape: f32[2,16,16], index: 8, kind: input, shape index: {}]
  %s9 = inlined_call_operand.vmem [shape: f32[2,16,1], index: 9, kind: input, shape index: {}]
  %s10 = inlined_call_operand.vmem [shape: f32[2,8,256], index: 10, kind: output, shape index: {0}]
  %s11 = inlined_call_operand.vmem [shape: f32[2,8,256], index: 11, kind: output, shape index: {1}]
  %s12 = inlined_call_operand.vmem [shape: f32[2,8,256], index: 12, kind: output, shape index: {2}]
  %13 = xla_tuple %s10, %s11, %s12
  %s14 = sld [smem:[#allocation0]]
  $region89: #{block_forward.1} parent=0
    _
  %s16 = ssub.s32 1, %s14
  %s17 = scalar_select 0, %s16, %s14
  loop: start=0, step=1, limit=4
  $region2: #{block_forward.1} parent=0 // loop_pre_header
    _
  $region3: #{block_forward.1} parent=0 // loop_header
    %s19 = sphi 0, %s23
    %p20 = scmp.ge.s32.totalorder %s19, 4
    %s29 = sphi 0, %s31
    %s32 = sphi 0, %s29
    %s33 = sphi 0, %s32
    %s49 = sphi 0, %s33
    %s53 = sphi 0, %s53
    %s55 = sphi 0, %s53
    %s56 = sphi 0, %s55
    %s70 = sphi 0, %s56
    %s74 = sphi 0, %s74
    %s76 = sphi 0, %s74
    %s77 = sphi 0, %s76
    %s91 = sphi 0, %s77
    %s95 = sphi 0, %s95
    %s97 = sphi 0, %s95
    %s98 = sphi 0, %s97
    %s112 = sphi 0, %s98
    %s116 = sphi 0, %s116
    %s118 = sphi 0, %s116
    %s119 = sphi 0, %s118
    %s133 = sphi 0, %s119
    %s137 = sphi 0, %s137
    %s139 = sphi 0, %s137
    %s140 = sphi 0, %s139
    %s154 = sphi 0, %s140
    %s158 = sphi 0, %s158
    %s160 = sphi 0, %s158
    %s161 = sphi 0, %s160
    %s175 = sphi 0, %s161
    %s179 = sphi 0, %s179
    %s181 = sphi 0, %s179
    %s182 = sphi 0, %s181
    %s196 = sphi 0, %s182
    %s200 = sphi 0, %s200
    %s202 = sphi 0, %s200
    %s203 = sphi 0, %s202
    %s217 = sphi 0, %s203
    %s221 = sphi 0, %s221
    %s223 = sphi 0, %s221
    %s224 = sphi 0, %s223
    %s238 = sphi 0, %s224
    %s244 = sphi 0, %s246
    %s247 = sphi 0, %s244
    %s248 = sphi 0, %s247
    %s264 = sphi 0, %s248
    %s270 = sphi 0, %s272
    %s273 = sphi 0, %s270
    %s274 = sphi 0, %s273
    %s290 = sphi 0, %s274
    %s296 = sphi 0, %s298
    %s299 = sphi 0, %s296
    %s300 = sphi 0, %s299
    %s316 = sphi 0, %s300
  $region4: #{block_forward.1} parent=0 // loop_header_branch
    %22 = sbr.rel (%p20) target = $region8
  $region5: #{block_forward.1} parent=0 // loop_body
    %s24 = ssub.s32 %s19, 1
    %s25 = ssub.s32 %s19, 2
    %s26 = sadd.s32 %s19, 1
    %s27 = ssub.s32 %s19, %s26
    %p28 = scmp.eq.s32.totalorder %s27, 0
    %s30 = sadd.s32 %s29, 1
    %s31 = scalar_select %p28, %s29, %s30
    %p34 = pneg %p28
    %p35 = scmp.eq.s32.totalorder %s19, 1
    %p36 = por %p34, %p35
    %p37 = scmp.ne.s32.totalorder %s29, %s32
    %p38 = scmp.eq.s32.totalorder %s19, 0
    %p39 = por %p37, %p38
    %p40 = scmp.ne.s32.totalorder %s29, %s32
    %p41 = scmp.eq.s32.totalorder %s24, 1
    %p42 = por %p40, %p41
    %p43 = scmp.ne.s32.totalorder %s32, %s33
    %p44 = scmp.eq.s32.totalorder %s24, 0
    %p45 = por %p43, %p44
    %p46 = scmp.ne.s32.totalorder %s32, %s33
    %p47 = scmp.eq.s32.totalorder %s25, 1
    %p48 = por %p46, %p47
    %p50 = scmp.ne.s32.totalorder %s33, %s49
    %p51 = scmp.eq.s32.totalorder %s25, 0
    %p52 = por %p50, %p51
    %s54 = sadd.s32 %s53, 1
    %p57 = scmp.eq.s32.totalorder %s19, 1
    %p58 = scmp.ne.s32.totalorder %s53, %s55
    %p59 = scmp.eq.s32.totalorder %s19, 0
    %p60 = por %p58, %p59
    %p61 = scmp.ne.s32.totalorder %s53, %s55
    %p62 = scmp.eq.s32.totalorder %s24, 1
    %p63 = por %p61, %p62
    %p64 = scmp.ne.s32.totalorder %s55, %s56
    %p65 = scmp.eq.s32.totalorder %s24, 0
    %p66 = por %p64, %p65
    %p67 = scmp.ne.s32.totalorder %s55, %s56
    %p68 = scmp.eq.s32.totalorder %s25, 1
    %p69 = por %p67, %p68
    %p71 = scmp.ne.s32.totalorder %s56, %s70
    %p72 = scmp.eq.s32.totalorder %s25, 0
    %p73 = por %p71, %p72
    %s75 = sadd.s32 %s74, 1
    %p78 = scmp.eq.s32.totalorder %s19, 1
    %p79 = scmp.ne.s32.totalorder %s74, %s76
    %p80 = scmp.eq.s32.totalorder %s19, 0
    %p81 = por %p79, %p80
    %p82 = scmp.ne.s32.totalorder %s74, %s76
    %p83 = scmp.eq.s32.totalorder %s24, 1
    %p84 = por %p82, %p83
    %p85 = scmp.ne.s32.totalorder %s76, %s77
    %p86 = scmp.eq.s32.totalorder %s24, 0
    %p87 = por %p85, %p86
    %p88 = scmp.ne.s32.totalorder %s76, %s77
    %p89 = scmp.eq.s32.totalorder %s25, 1
    %p90 = por %p88, %p89
    %p92 = scmp.ne.s32.totalorder %s77, %s91
    %p93 = scmp.eq.s32.totalorder %s25, 0
    %p94 = por %p92, %p93
    %s96 = sadd.s32 %s95, 1
    %p99 = scmp.eq.s32.totalorder %s19, 1
    %p100 = scmp.ne.s32.totalorder %s95, %s97
    %p101 = scmp.eq.s32.totalorder %s19, 0
    %p102 = por %p100, %p101
    %p103 = scmp.ne.s32.totalorder %s95, %s97
    %p104 = scmp.eq.s32.totalorder %s24, 1
    %p105 = por %p103, %p104
    %p106 = scmp.ne.s32.totalorder %s97, %s98
    %p107 = scmp.eq.s32.totalorder %s24, 0
    %p108 = por %p106, %p107
    %p109 = scmp.ne.s32.totalorder %s97, %s98
    %p110 = scmp.eq.s32.totalorder %s25, 1
    %p111 = por %p109, %p110
    %p113 = scmp.ne.s32.totalorder %s98, %s112
    %p114 = scmp.eq.s32.totalorder %s25, 0
    %p115 = por %p113, %p114
    %s117 = sadd.s32 %s116, 1
    %p120 = scmp.eq.s32.totalorder %s19, 1
    %p121 = scmp.ne.s32.totalorder %s116, %s118
    %p122 = scmp.eq.s32.totalorder %s19, 0
    %p123 = por %p121, %p122
    %p124 = scmp.ne.s32.totalorder %s116, %s118
    %p125 = scmp.eq.s32.totalorder %s24, 1
    %p126 = por %p124, %p125
    %p127 = scmp.ne.s32.totalorder %s118, %s119
    %p128 = scmp.eq.s32.totalorder %s24, 0
    %p129 = por %p127, %p128
    %p130 = scmp.ne.s32.totalorder %s118, %s119
    %p131 = scmp.eq.s32.totalorder %s25, 1
    %p132 = por %p130, %p131
    %p134 = scmp.ne.s32.totalorder %s119, %s133
    %p135 = scmp.eq.s32.totalorder %s25, 0
    %p136 = por %p134, %p135
    %s138 = sadd.s32 %s137, 1
    %p141 = scmp.eq.s32.totalorder %s19, 1
    %p142 = scmp.ne.s32.totalorder %s137, %s139
    %p143 = scmp.eq.s32.totalorder %s19, 0
    %p144 = por %p142, %p143
    %p145 = scmp.ne.s32.totalorder %s137, %s139
    %p146 = scmp.eq.s32.totalorder %s24, 1
    %p147 = por %p145, %p146
    %p148 = scmp.ne.s32.totalorder %s139, %s140
    %p149 = scmp.eq.s32.totalorder %s24, 0
    %p150 = por %p148, %p149
    %p151 = scmp.ne.s32.totalorder %s139, %s140
    %p152 = scmp.eq.s32.totalorder %s25, 1
    %p153 = por %p151, %p152
    %p155 = scmp.ne.s32.totalorder %s140, %s154
    %p156 = scmp.eq.s32.totalorder %s25, 0
    %p157 = por %p155, %p156
    %s159 = sadd.s32 %s158, 1
    %p162 = scmp.eq.s32.totalorder %s19, 1
    %p163 = scmp.ne.s32.totalorder %s158, %s160
    %p164 = scmp.eq.s32.totalorder %s19, 0
    %p165 = por %p163, %p164
    %p166 = scmp.ne.s32.totalorder %s158, %s160
    %p167 = scmp.eq.s32.totalorder %s24, 1
    %p168 = por %p166, %p167
    %p169 = scmp.ne.s32.totalorder %s160, %s161
    %p170 = scmp.eq.s32.totalorder %s24, 0
    %p171 = por %p169, %p170
    %p172 = scmp.ne.s32.totalorder %s160, %s161
    %p173 = scmp.eq.s32.totalorder %s25, 1
    %p174 = por %p172, %p173
    %p176 = scmp.ne.s32.totalorder %s161, %s175
    %p177 = scmp.eq.s32.totalorder %s25, 0
    %p178 = por %p176, %p177
    %s180 = sadd.s32 %s179, 1
    %p183 = scmp.eq.s32.totalorder %s19, 1
    %p184 = scmp.ne.s32.totalorder %s179, %s181
    %p185 = scmp.eq.s32.totalorder %s19, 0
    %p186 = por %p184, %p185
    %p187 = scmp.ne.s32.totalorder %s179, %s181
    %p188 = scmp.eq.s32.totalorder %s24, 1
    %p189 = por %p187, %p188
    %p190 = scmp.ne.s32.totalorder %s181, %s182
    %p191 = scmp.eq.s32.totalorder %s24, 0
    %p192 = por %p190, %p191
    %p193 = scmp.ne.s32.totalorder %s181, %s182
    %p194 = scmp.eq.s32.totalorder %s25, 1
    %p195 = por %p193, %p194
    %p197 = scmp.ne.s32.totalorder %s182, %s196
    %p198 = scmp.eq.s32.totalorder %s25, 0
    %p199 = por %p197, %p198
    %s201 = sadd.s32 %s200, 1
    %p204 = scmp.eq.s32.totalorder %s19, 1
    %p205 = scmp.ne.s32.totalorder %s200, %s202
    %p206 = scmp.eq.s32.totalorder %s19, 0
    %p207 = por %p205, %p206
    %p208 = scmp.ne.s32.totalorder %s200, %s202
    %p209 = scmp.eq.s32.totalorder %s24, 1
    %p210 = por %p208, %p209
    %p211 = scmp.ne.s32.totalorder %s202, %s203
    %p212 = scmp.eq.s32.totalorder %s24, 0
    %p213 = por %p211, %p212
    %p214 = scmp.ne.s32.totalorder %s202, %s203
    %p215 = scmp.eq.s32.totalorder %s25, 1
    %p216 = por %p214, %p215
    %p218 = scmp.ne.s32.totalorder %s203, %s217
    %p219 = scmp.eq.s32.totalorder %s25, 0
    %p220 = por %p218, %p219
    %s222 = sadd.s32 %s221, 1
    %p225 = scmp.eq.s32.totalorder %s19, 1
    %p226 = scmp.ne.s32.totalorder %s221, %s223
    %p227 = scmp.eq.s32.totalorder %s19, 0
    %p228 = por %p226, %p227
    %p229 = scmp.ne.s32.totalorder %s221, %s223
    %p230 = scmp.eq.s32.totalorder %s24, 1
    %p231 = por %p229, %p230
    %p232 = scmp.ne.s32.totalorder %s223, %s224
    %p233 = scmp.eq.s32.totalorder %s24, 0
    %p234 = por %p232, %p233
    %p235 = scmp.ne.s32.totalorder %s223, %s224
    %p236 = scmp.eq.s32.totalorder %s25, 1
    %p237 = por %p235, %p236
    %p239 = scmp.ne.s32.totalorder %s224, %s238
    %p240 = scmp.eq.s32.totalorder %s25, 0
    %p241 = por %p239, %p240
    %s242 = ssub.s32 %s19, %s26
    %p243 = scmp.eq.s32.totalorder %s242, 0
    %s245 = sadd.s32 %s244, 1
    %s246 = scalar_select %p243, %s244, %s245
    %p249 = pneg %p243
    %p250 = scmp.eq.s32.totalorder %s19, 1
    %p251 = por %p249, %p250
    %p252 = scmp.ne.s32.totalorder %s244, %s247
    %p253 = scmp.eq.s32.totalorder %s19, 0
    %p254 = por %p252, %p253
    %p255 = scmp.ne.s32.totalorder %s244, %s247
    %p256 = scmp.eq.s32.totalorder %s24, 1
    %p257 = por %p255, %p256
    %p258 = scmp.ne.s32.totalorder %s247, %s248
    %p259 = scmp.eq.s32.totalorder %s24, 0
    %p260 = por %p258, %p259
    %p261 = scmp.ne.s32.totalorder %s247, %s248
    %p262 = scmp.eq.s32.totalorder %s25, 1
    %p263 = por %p261, %p262
    %p265 = scmp.ne.s32.totalorder %s248, %s264
    %p266 = scmp.eq.s32.totalorder %s25, 0
    %p267 = por %p265, %p266
    %s268 = ssub.s32 %s19, %s26
    %p269 = scmp.eq.s32.totalorder %s268, 0
    %s271 = sadd.s32 %s270, 1
    %s272 = scalar_select %p269, %s270, %s271
    %p275 = pneg %p269
    %p276 = scmp.eq.s32.totalorder %s19, 1
    %p277 = por %p275, %p276
    %p278 = scmp.ne.s32.totalorder %s270, %s273
    %p279 = scmp.eq.s32.totalorder %s19, 0
    %p280 = por %p278, %p279
    %p281 = scmp.ne.s32.totalorder %s270, %s273
    %p282 = scmp.eq.s32.totalorder %s24, 1
    %p283 = por %p281, %p282
    %p284 = scmp.ne.s32.totalorder %s273, %s274
    %p285 = scmp.eq.s32.totalorder %s24, 0
    %p286 = por %p284, %p285
    %p287 = scmp.ne.s32.totalorder %s273, %s274
    %p288 = scmp.eq.s32.totalorder %s25, 1
    %p289 = por %p287, %p288
    %p291 = scmp.ne.s32.totalorder %s274, %s290
    %p292 = scmp.eq.s32.totalorder %s25, 0
    %p293 = por %p291, %p292
    %s294 = ssub.s32 %s19, %s26
    %p295 = scmp.eq.s32.totalorder %s294, 0
    %s297 = sadd.s32 %s296, 1
    %s298 = scalar_select %p295, %s296, %s297
    %p301 = pneg %p295
    %p302 = scmp.eq.s32.totalorder %s19, 1
    %p303 = por %p301, %p302
    %p304 = scmp.ne.s32.totalorder %s296, %s299
    %p305 = scmp.eq.s32.totalorder %s19, 0
    %p306 = por %p304, %p305
    %p307 = scmp.ne.s32.totalorder %s296, %s299
    %p308 = scmp.eq.s32.totalorder %s24, 1
    %p309 = por %p307, %p308
    %p310 = scmp.ne.s32.totalorder %s299, %s300
    %p311 = scmp.eq.s32.totalorder %s24, 0
    %p312 = por %p310, %p311
    %p313 = scmp.ne.s32.totalorder %s299, %s300
    %p314 = scmp.eq.s32.totalorder %s25, 1
    %p315 = por %p313, %p314
    %p317 = scmp.ne.s32.totalorder %s300, %s316
    %p318 = scmp.eq.s32.totalorder %s25, 0
    %p319 = por %p317, %p318
    %p320 = scmp.le.s32.totalorder 1, %s19
    %p321 = scmp.lt.s32.totalorder %s19, 3
    %p322 = pnand %p320, %p321
    %p323 = pneg %p322
    // Predicated region
    $region9: #{block_forward.1} parent=5 // pred_check
      _
    $region10: #{block_forward.1} parent=5 // pred_check_branch
      %325 = sbr.rel (%p322) target = $region12
    $region11: #{block_forward.1} parent=5 // pred_region
      %s326 = ssub.s32 %s19, 1
      // Predicated region
      $region13: #{block_forward.1} parent=11 // pred_check
        %p327 = pneg %p66
      $region14: #{block_forward.1} parent=11 // pred_check_branch
        %329 = sbr.rel (%p327) target = $region16
      $region15: #{block_forward.1} parent=11 // pred_region
        _
      $region16: #{block_forward.1} parent=11 // pred_fallthru
        _
      // Predicated region
      $region17: #{block_forward.1} parent=11 // pred_check
        %p330 = pneg %p87
      $region18: #{block_forward.1} parent=11 // pred_check_branch
        %332 = sbr.rel (%p330) target = $region20
      $region19: #{block_forward.1} parent=11 // pred_region
        _
      $region20: #{block_forward.1} parent=11 // pred_fallthru
        _
      // Predicated region
      $region21: #{block_forward.1} parent=11 // pred_check
        %p333 = pneg %p108
      $region22: #{block_forward.1} parent=11 // pred_check_branch
        %335 = sbr.rel (%p333) target = $region24
      $region23: #{block_forward.1} parent=11 // pred_region
        _
      $region24: #{block_forward.1} parent=11 // pred_fallthru
        _
      // Predicated region
      $region25: #{block_forward.1} parent=11 // pred_check
        %p336 = pneg %p129
      $region26: #{block_forward.1} parent=11 // pred_check_branch
        %338 = sbr.rel (%p336) target = $region28
      $region27: #{block_forward.1} parent=11 // pred_region
        _
      $region28: #{block_forward.1} parent=11 // pred_fallthru
        _
      // Predicated region
      $region29: #{block_forward.1} parent=11 // pred_check
        %p339 = pneg %p150
      $region30: #{block_forward.1} parent=11 // pred_check_branch
        %341 = sbr.rel (%p339) target = $region32
      $region31: #{block_forward.1} parent=11 // pred_region
        _
      $region32: #{block_forward.1} parent=11 // pred_fallthru
        _
      // Predicated region
      $region33: #{block_forward.1} parent=11 // pred_check
        %p342 = pneg %p171
      $region34: #{block_forward.1} parent=11 // pred_check_branch
        %344 = sbr.rel (%p342) target = $region36
      $region35: #{block_forward.1} parent=11 // pred_region
        _
      $region36: #{block_forward.1} parent=11 // pred_fallthru
        _
      // Predicated region
      $region37: #{block_forward.1} parent=11 // pred_check
        %p345 = pneg %p192
      $region38: #{block_forward.1} parent=11 // pred_check_branch
        %347 = sbr.rel (%p345) target = $region40
      $region39: #{block_forward.1} parent=11 // pred_region
        _
      $region40: #{block_forward.1} parent=11 // pred_fallthru
        _
      // Predicated region
      $region41: #{block_forward.1} parent=11 // pred_check
        %p348 = pneg %p213
      $region42: #{block_forward.1} parent=11 // pred_check_branch
        %350 = sbr.rel (%p348) target = $region44
      $region43: #{block_forward.1} parent=11 // pred_region
        _
      $region44: #{block_forward.1} parent=11 // pred_fallthru
        _
      // Predicated region
      $region45: #{block_forward.1} parent=11 // pred_check
        %p351 = pneg %p234
      $region46: #{block_forward.1} parent=11 // pred_check_branch
        %353 = sbr.rel (%p351) target = $region48
      $region47: #{block_forward.1} parent=11 // pred_region
        _
      $region48: #{block_forward.1} parent=11 // pred_fallthru
        _
    $region12: #{block_forward.1} parent=5 // pred_fallthru
      _
    %p354 = scmp.lt.s32.totalorder %s19, 2
    // Predicated region
    $region49: #{block_forward.1} parent=5 // pred_check
      %p355 = pneg %p354
    $region50: #{block_forward.1} parent=5 // pred_check_branch
      %357 = sbr.rel (%p355) target = $region52
    $region51: #{block_forward.1} parent=5 // pred_region
      // Predicated region
      $region53: #{block_forward.1} parent=51 // pred_check
        %p358 = pneg %p39
      $region54: #{block_forward.1} parent=51 // pred_check_branch
        %360 = sbr.rel (%p358) target = $region56
      $region55: #{block_forward.1} parent=51 // pred_region
        %p361 = scmp.lt.s32.totalorder %s19, 1
        %s362 = scalar_select %p361, %s19, 1
        %s363 = smul.addr %s362, 28
        %s364 = smul.addr %s363, 8
        %s365 = scalar_lea.vmem %s0, %s364
      $region56: #{block_forward.1} parent=51 // pred_fallthru
        _
    $region52: #{block_forward.1} parent=5 // pred_fallthru
      _
    %p366 = scmp.le.s32.totalorder 1, %s19
    %p367 = scmp.lt.s32.totalorder %s19, 3
    %p368 = pnand %p366, %p367
    %p369 = pneg %p368
    // Predicated region
    $region57: #{block_forward.1} parent=5 // pred_check
      _
    $region58: #{block_forward.1} parent=5 // pred_check_branch
      %371 = sbr.rel (%p368) target = $region60
    $region59: #{block_forward.1} parent=5 // pred_region
      %s372 = ssub.s32 %s19, 1
      %p373 = scmp.lt.s32.totalorder %s24, 1
      %s374 = scalar_select %p373, %s24, 1
      %s375 = smul.addr %s374, 28
      %s376 = smul.addr %s375, 8
      %s377 = scalar_lea.vmem %s0, %s376
      %p378 = pneg %p45
      %p379 = pneg %p42
      %p380 = pneg %p66
      %p381 = pneg %p63
      %p382 = pneg %p87
      %p383 = pneg %p84
      %p384 = pneg %p108
      %p385 = pneg %p105
      %p386 = pneg %p129
      %p387 = pneg %p126
      %p388 = pneg %p150
      %p389 = pneg %p147
      %p390 = pneg %p171
      %p391 = pneg %p168
      %p392 = pneg %p192
      %p393 = pneg %p189
      %p394 = pneg %p213
      %p395 = pneg %p210
      %p396 = pneg %p234
      %p397 = pneg %p231
      %p398 = pneg %p260
      %p399 = pneg %p257
      %p400 = scmp.lt.s32.totalorder %s24, 1
      %s401 = scalar_select %p400, %s24, 1
      %s402 = smul.addr %s401, 2
      %s403 = smul.addr %s402, 8
      %s404 = scalar_lea.vmem %s10, %s403
      %p405 = pneg %p286
      %p406 = pneg %p283
      %p407 = scmp.lt.s32.totalorder %s24, 1
      %s408 = scalar_select %p407, %s24, 1
      %s409 = smul.addr %s408, 2
      %s410 = smul.addr %s409, 8
      %s411 = scalar_lea.vmem %s11, %s410
      %p412 = pneg %p312
      %p413 = pneg %p309
      %p414 = scmp.lt.s32.totalorder %s24, 1
      %s415 = scalar_select %p414, %s24, 1
      %s416 = smul.addr %s415, 2
      %s417 = smul.addr %s416, 8
      %s418 = scalar_lea.vmem %s12, %s417
      %p419 = scmp.lt.s32.totalorder %s24, 1
      %s420 = scalar_select %p419, %s24, 1
      %s421 = smul.addr %s420, 28
      %s422 = smul.addr %s421, 8
      %s423 = scalar_lea.vmem %s0, %s422
      %p424 = scmp.lt.s32.totalorder %s24, 1
      %s425 = scalar_select %p424, %s24, 1
      %s426 = smul.addr %s425, 2
      %s427 = smul.addr %s426, 8
      %s428 = scalar_lea.vmem %s10, %s427
      %p429 = scmp.lt.s32.totalorder %s24, 1
      %s430 = scalar_select %p429, %s24, 1
      %s431 = smul.addr %s430, 2
      %s432 = smul.addr %s431, 8
      %s433 = scalar_lea.vmem %s11, %s432
      %p434 = scmp.lt.s32.totalorder %s24, 1
      %s435 = scalar_select %p434, %s24, 1
      %s436 = smul.addr %s435, 2
      %s437 = smul.addr %s436, 8
      %s438 = scalar_lea.vmem %s12, %s437
      %v439 = vld [vmem:[%s1] sm:$0xff]
      %v440 = vld [vmem:[%s1 + $0x8] sm:$0xff]
      %v441 = vld [vmem:[%s1 + $0x10] sm:$0xff]
      %v442 = vld [vmem:[%s423] sm:$0xff]
      %v443 = vld [vmem:[%s423 + $0x8] sm:$0xff]
      %v444 = vld [vmem:[%s423 + $0x10] sm:$0xff]
      %v445 = vld [vmem:[%s423 + $0x18] sm:$0xff]
      %v446 = vld [vmem:[%s423 + $0x20] sm:$0xff]
      %v447 = vld [vmem:[%s423 + $0x28] sm:$0xff]
      %v448 = vld [vmem:[%s423 + $0x30] sm:$0xff]
      %v449 = vld [vmem:[%s423 + $0x38] sm:$0xff]
      %v450 = vld [vmem:[%s423 + $0x40] sm:$0xff]
      %v451 = vld [vmem:[%s423 + $0x48] sm:$0xff]
      %v452 = vld [vmem:[%s423 + $0x50] sm:$0xff]
      %v453 = vld [vmem:[%s423 + $0x58] sm:$0xff]
      %v454 = vld [vmem:[%s423 + $0x60] sm:$0xff]
      %v455 = vld [vmem:[%s423 + $0x68] sm:$0xff]
      %v456 = vld [vmem:[%s423 + $0x70] sm:$0xff]
      %v457 = vld [vmem:[%s423 + $0x78] sm:$0xff]
      %v458 = vld [vmem:[%s423 + $0x80] sm:$0xff]
      %v459 = vld [vmem:[%s423 + $0x88] sm:$0xff]
      %v460 = vld [vmem:[%s423 + $0x90] sm:$0xff]
      %v461 = vld [vmem:[%s423 + $0x98] sm:$0xff]
      %v462 = vld [vmem:[%s423 + $0xa0] sm:$0xff]
      %v463 = vld [vmem:[%s423 + $0xa8] sm:$0xff]
      %v464 = vld [vmem:[%s423 + $0xb0] sm:$0xff]
      %v465 = vld [vmem:[%s423 + $0xb8] sm:$0xff]
      %v466 = vld [vmem:[%s423 + $0xc0] sm:$0xff]
      %v467 = vld [vmem:[%s423 + $0xc8] sm:$0xff]
      %v468 = vld [vmem:[%s423 + $0xd0] sm:$0xf]
      %v469 = vld [vmem:[%s423 + $0xd8] sm:$0xf]
      %v470 = vld [vmem:[%s2] sm:$0xff]
      %v471 = vld [vmem:[%s2 + $0x8] sm:$0xff]
      %v472 = vld [vmem:[%s2 + $0x10] sm:$0xff]
      %474 = vset.pattern.permute.xlu0 0
      %475 = vperm.xlu0 %474, %v470
      %v476 = vpop.permute.xlu0 %475
      %479 = vset.pattern.permute.xlu0 0
      %480 = vperm.xlu0 %479, %v471
      %v481 = vpop.permute.xlu0 %480
      %484 = vset.pattern.permute.xlu0 0
      %485 = vperm.xlu0 %484, %v472
      %v486 = vpop.permute.xlu0 %485
      %vm488 = vcmask 883712
      %v490 = vsel %vm488, %v439, 0
      %v493 = vsel %vm488, %v440, 0
      %v496 = vsel %vm488, %v441, 0
      %vm498 = vcmask 1043456
      %v500 = vsel %vm498, %v468, 0
      %v503 = vsel %vm498, %v469, 0
      %505 = vmatprep.subr.mxu0 %v443
      %506 = vmatpush1.msra.mxu0 %v442
      %507 = vmatprep.subr.mxu0 %v445
      %508 = vmatpush1.msra.mxu0 %v444
      %509 = vmatprep.subr.mxu0 %v447
      %510 = vmatpush1.msra.mxu0 %v446
      %511 = vmatprep.subr.mxu0 %v449
      %512 = vmatpush1.msra.mxu0 %v448
      %513 = vmatprep.subr.mxu0 %v451
      %514 = vmatpush1.msra.mxu0 %v450
      %515 = vmatprep.subr.mxu0 %v453
      %516 = vmatpush1.msra.mxu0 %v452
      %517 = vmatprep.subr.mxu0 %v455
      %518 = vmatpush1.msra.mxu0 %v454
      %519 = vmatprep.subr.mxu0 %v457
      %520 = vmatpush1.msra.mxu0 %v456
      %521 = vmatprep.subr.mxu0 %v459
      %522 = vmatpush1.msra.mxu0 %v458
      %523 = vmatprep.subr.mxu0 %v461
      %524 = vmatpush1.msra.mxu0 %v460
      %525 = vmatprep.subr.mxu0 %v463
      %526 = vmatpush1.msra.mxu0 %v462
      %527 = vmatprep.subr.mxu0 %v465
      %528 = vmatpush1.msra.mxu0 %v464
      %529 = vmatprep.subr.mxu0 %v467
      %530 = vmatpush1.msra.mxu0 %v466
      %531 = vmatprep.subr.mxu0 %v503
      %532 = vmatpush1.msra.mxu0 %v500
      %533 = vmatprep.subr.mxu0 0.0
      %534 = vmatpush1.msra.mxu0 0.0
      %535 = vmatprep.subr.mxu0 0.0
      %536 = vmatpush1.msra.mxu0 0.0
      %537 = vmatprep.subr.mxu0 0.0
      %538 = vmatpush1.msra.mxu0 0.0
      %539 = vmatprep.subr.mxu0 0.0
      %540 = vmatpush1.msra.mxu0 0.0
      %541 = vmatprep.subr.mxu0 0.0
      %542 = vmatpush1.msra.mxu0 0.0
      %543 = vmatprep.subr.mxu0 0.0
      %544 = vmatpush1.msra.mxu0 0.0
      %545 = vmatprep.subr.mxu0 0.0
      %546 = vmatpush1.msra.mxu0 0.0
      %547 = vmatprep.subr.mxu0 0.0
      %548 = vmatpush1.msra.mxu0 0.0
      %549 = vmatprep.subr.mxu0 0.0
      %550 = vmatpush1.msra.mxu0 0.0
      %551 = vmatprep.subr.mxu0 0.0
      %552 = vmatpush1.msra.mxu0 0.0
      %553 = vmatprep.subr.mxu0 0.0
      %554 = vmatpush1.msra.mxu0 0.0
      %555 = vmatprep.subr.mxu0 0.0
      %556 = vmatpush1.msra.mxu0 0.0
      %557 = vmatprep.subr.mxu0 0.0
      %558 = vmatpush1.msra.mxu0 0.0
      %559 = vmatprep.subr.mxu0 0.0
      %560 = vmatpush1.msra.mxu0 0.0
      %561 = vmatprep.subr.mxu0 0.0
      %562 = vmatpush1.msra.mxu0 0.0
      %563 = vmatprep.subr.mxu0 0.0
      %564 = vmatpush1.msra.mxu0 0.0
      %565 = vmatprep.subr.mxu0 0.0
      %566 = vmatpush1.msra.mxu0 0.0
      %567 = vmatprep.subr.mxu0 0.0
      %568 = vmatpush1.msra.mxu0 0.0
      %569 = vmatprep.mubr.f32.mxu0 0.0
      %570 = vmatmul.mubr.f32.gmra.mrb[0].mxu0 %v490
      %v571 = vpop.f32.mrb[0].mxu0
      %v572 = vadd.f32 %v476, %v571
      %v573 = vpop.f32.mrb[0].mxu0
      %v574 = vadd.f32 %v476, %v573
      %575 = vmatprep.mubr.f32.mxu0 0.0
      %576 = vmatmul.mubr.f32.gmra.mrb[0].mxu0 %v493
      %v577 = vpop.f32.mrb[0].mxu0
      %v578 = vadd.f32 %v481, %v577
      %v579 = vpop.f32.mrb[0].mxu0
      %v580 = vadd.f32 %v481, %v579
      %581 = vmatprep.mubr.f32.mxu0 0.0
      %582 = vmatmul.mubr.f32.gmra.mrb[0].mxu0 %v496
      %v583 = vpop.f32.mrb[0].mxu0
      %v584 = vadd.f32 %v486, %v583
      %v585 = vpop.f32.mrb[0].mxu0
      %v586 = vadd.f32 %v486, %v585
      %587 = vdwg.mxu0
      %v588 = vmax.f32 %v572, 0.0
      %v589 = vmax.f32 %v574, 0.0
      %v590 = vmax.f32 %v578, 0.0
      %v591 = vmax.f32 %v580, 0.0
      %v592 = vmax.f32 %v584, 0.0
      %v593 = vmax.f32 %v586, 0.0
      %v594 = vld [vmem:[%s3] sm:$0xff]
      %v595 = vld [vmem:[%s3 + $0x8] sm:$0xff]
      %v596 = vld [vmem:[%s3 + $0x10] sm:$0xff]
      %v597 = vld [vmem:[%s3 + $0x18] sm:$0xff]
      %v598 = vld [vmem:[%s3 + $0x20] sm:$0xff]
      %v599 = vld [vmem:[%s3 + $0x28] sm:$0xff]
      %v600 = vld [vmem:[%s3 + $0x30] sm:$0xff]
      %v601 = vld [vmem:[%s3 + $0x38] sm:$0xff]
      %v602 = vld [vmem:[%s3 + $0x40] sm:$0xff]
      %v603 = vld [vmem:[%s3 + $0x48] sm:$0xff]
      %v604 = vld [vmem:[%s3 + $0x50] sm:$0xff]
      %v605 = vld [vmem:[%s3 + $0x58] sm:$0xff]
      %v606 = vld [vmem:[%s3 + $0x60] sm:$0xff]
      %v607 = vld [vmem:[%s3 + $0x68] sm:$0xff]
      %v608 = vld [vmem:[%s3 + $0x70] sm:$0xff]
      %v609 = vld [vmem:[%s3 + $0x78] sm:$0xff]
      %v610 = vld [vmem:[%s3 + $0x80] sm:$0xff]
      %v611 = vld [vmem:[%s3 + $0x88] sm:$0xff]
      %v612 = vld [vmem:[%s3 + $0x90] sm:$0xff]
      %v613 = vld [vmem:[%s3 + $0x98] sm:$0xff]
      %v614 = vld [vmem:[%s3 + $0xa0] sm:$0xff]
      %v615 = vld [vmem:[%s3 + $0xa8] sm:$0xff]
      %v616 = vld [vmem:[%s3 + $0xb0] sm:$0xff]
      %v617 = vld [vmem:[%s3 + $0xb8] sm:$0xff]
      %v618 = vld [vmem:[%s3 + $0xc0] sm:$0xff]
      %v619 = vld [vmem:[%s3 + $0xc8] sm:$0xff]
      %v620 = vld [vmem:[%s3 + $0xd0] sm:$0xff]
      %v621 = vld [vmem:[%s3 + $0xd8] sm:$0xff]
      %v622 = vld [vmem:[%s3 + $0xe0] sm:$0xff]
      %v623 = vld [vmem:[%s3 + $0xe8] sm:$0xff]
      %v624 = vld [vmem:[%s3 + $0xf0] sm:$0xff]
      %v625 = vld [vmem:[%s3 + $0xf8] sm:$0xff]
      %v626 = vld [vmem:[%s3 + $0x100] sm:$0xff]
      %v627 = vld [vmem:[%s3 + $0x108] sm:$0xff]
      %v628 = vld [vmem:[%s3 + $0x110] sm:$0xff]
      %v629 = vld [vmem:[%s3 + $0x118] sm:$0xff]
      %v630 = vld [vmem:[%s3 + $0x120] sm:$0xff]
      %v631 = vld [vmem:[%s3 + $0x128] sm:$0xff]
      %v632 = vld [vmem:[%s3 + $0x130] sm:$0xff]
      %v633 = vld [vmem:[%s3 + $0x138] sm:$0xff]
      %v634 = vld [vmem:[%s3 + $0x140] sm:$0xff]
      %v635 = vld [vmem:[%s3 + $0x148] sm:$0xff]
      %v636 = vld [vmem:[%s3 + $0x150] sm:$0xff]
      %v637 = vld [vmem:[%s3 + $0x158] sm:$0xff]
      %v638 = vld [vmem:[%s3 + $0x160] sm:$0xff]
      %v639 = vld [vmem:[%s3 + $0x168] sm:$0xff]
      %v640 = vld [vmem:[%s3 + $0x170] sm:$0xff]
      %v641 = vld [vmem:[%s3 + $0x178] sm:$0xff]
      %v642 = vld [vmem:[%s3 + $0x180] sm:$0xff]
      %v643 = vld [vmem:[%s3 + $0x188] sm:$0xff]
      %v644 = vld [vmem:[%s3 + $0x190] sm:$0xff]
      %v645 = vld [vmem:[%s3 + $0x198] sm:$0xff]
      %v646 = vld [vmem:[%s3 + $0x1a0] sm:$0xff]
      %v647 = vld [vmem:[%s3 + $0x1a8] sm:$0xff]
      %v648 = vld [vmem:[%s3 + $0x1b0] sm:$0xff]
      %v649 = vld [vmem:[%s3 + $0x1b8] sm:$0xff]
      %v650 = vld [vmem:[%s3 + $0x1c0] sm:$0xff]
      %v651 = vld [vmem:[%s3 + $0x1c8] sm:$0xff]
      %v652 = vld [vmem:[%s3 + $0x1d0] sm:$0xff]
      %v653 = vld [vmem:[%s3 + $0x1d8] sm:$0xff]
      %v654 = vld [vmem:[%s3 + $0x1e0] sm:$0xff]
      %v655 = vld [vmem:[%s3 + $0x1e8] sm:$0xff]
      %v656 = vld [vmem:[%s3 + $0x1f0] sm:$0xff]
      %v657 = vld [vmem:[%s3 + $0x1f8] sm:$0xff]
      %658 = vmatprep.subr.mxu0 %v595
      %659 = vmatpush1.msra.mxu0 %v594
      %660 = vmatprep.subr.mxu0 %v597
      %661 = vmatpush1.msra.mxu0 %v596
      %662 = vmatprep.subr.mxu0 %v599
      %663 = vmatpush1.msra.mxu0 %v598
      %664 = vmatprep.subr.mxu0 %v601
      %665 = vmatpush1.msra.mxu0 %v600
      %666 = vmatprep.subr.mxu0 %v603
      %667 = vmatpush1.msra.mxu0 %v602
      %668 = vmatprep.subr.mxu0 %v605
      %669 = vmatpush1.msra.mxu0 %v604
      %670 = vmatprep.subr.mxu0 %v607
      %671 = vmatpush1.msra.mxu0 %v606
      %672 = vmatprep.subr.mxu0 %v609
      %673 = vmatpush1.msra.mxu0 %v608
      %674 = vmatprep.subr.mxu0 %v611
      %675 = vmatpush1.msra.mxu0 %v610
      %676 = vmatprep.subr.mxu0 %v613
      %677 = vmatpush1.msra.mxu0 %v612
      %678 = vmatprep.subr.mxu0 %v615
      %679 = vmatpush1.msra.mxu0 %v614
      %680 = vmatprep.subr.mxu0 %v617
      %681 = vmatpush1.msra.mxu0 %v616
      %682 = vmatprep.subr.mxu0 %v619
      %683 = vmatpush1.msra.mxu0 %v618
      %684 = vmatprep.subr.mxu0 %v621
      %685 = vmatpush1.msra.mxu0 %v620
      %686 = vmatprep.subr.mxu0 %v623
      %687 = vmatpush1.msra.mxu0 %v622
      %688 = vmatprep.subr.mxu0 %v625
      %689 = vmatpush1.msra.mxu0 %v624
      %690 = vmatprep.subr.mxu0 %v627
      %691 = vmatpush1.msra.mxu0 %v626
      %692 = vmatprep.subr.mxu0 %v629
      %693 = vmatpush1.msra.mxu0 %v628
      %694 = vmatprep.subr.mxu0 %v631
      %695 = vmatpush1.msra.mxu0 %v630
      %696 = vmatprep.subr.mxu0 %v633
      %697 = vmatpush1.msra.mxu0 %v632
      %698 = vmatprep.subr.mxu0 %v635
      %699 = vmatpush1.msra.mxu0 %v634
      %700 = vmatprep.subr.mxu0 %v637
      %701 = vmatpush1.msra.mxu0 %v636
      %702 = vmatprep.subr.mxu0 %v639
      %703 = vmatpush1.msra.mxu0 %v638
      %704 = vmatprep.subr.mxu0 %v641
      %705 = vmatpush1.msra.mxu0 %v640
      %706 = vmatprep.subr.mxu0 %v643
      %707 = vmatpush1.msra.mxu0 %v642
      %708 = vmatprep.subr.mxu0 %v645
      %709 = vmatpush1.msra.mxu0 %v644
      %710 = vmatprep.subr.mxu0 %v647
      %711 = vmatpush1.msra.mxu0 %v646
      %712 = vmatprep.subr.mxu0 %v649
      %713 = vmatpush1.msra.mxu0 %v648
      %714 = vmatprep.subr.mxu0 %v651
      %715 = vmatpush1.msra.mxu0 %v650
      %716 = vmatprep.subr.mxu0 %v653
      %717 = vmatpush1.msra.mxu0 %v652
      %718 = vmatprep.subr.mxu0 %v655
      %719 = vmatpush1.msra.mxu0 %v654
      %720 = vmatprep.subr.mxu0 %v657
      %721 = vmatpush1.msra.mxu0 %v656
      %722 = vmatprep.mubr.f32.mxu0 %v589
      %723 = vmatmul.mubr.f32.gmra.mrb[0].mxu0 %v588
      %v724 = vpop.f32.mrb[0].mxu0
      %v725 = vadd.f32 0.0, %v724
      %v726 = vpop.f32.mrb[0].mxu0
      %v727 = vadd.f32 0.0, %v726
      %728 = vmatprep.mubr.f32.mxu0 %v591
      %729 = vmatmul.mubr.f32.gmra.mrb[0].mxu0 %v590
      %v730 = vpop.f32.mrb[0].mxu0
      %v731 = vadd.f32 0.0, %v730
      %v732 = vpop.f32.mrb[0].mxu0
      %v733 = vadd.f32 0.0, %v732
      %734 = vmatprep.mubr.f32.mxu0 %v593
      %735 = vmatmul.mubr.f32.gmra.mrb[0].mxu0 %v592
      %v736 = vpop.f32.mrb[0].mxu0
      %v737 = vadd.f32 0.0, %v736
      %v738 = vpop.f32.mrb[0].mxu0
      %v739 = vadd.f32 0.0, %v738
      %740 = vdwg.mxu0
      %v741 = vmax.f32 %v588, %v725
      %v742 = vmax.f32 %v589, %v727
      %v743 = vmax.f32 %v590, %v731
      %v744 = vmax.f32 %v591, %v733
      %v745 = vmax.f32 %v592, %v737
      %v746 = vmax.f32 %v593, %v739
      %s747 = scalar_lea.vmem %s3, 512
      %v748 = vld [vmem:[%s747] sm:$0xff]
      %v749 = vld [vmem:[%s747 + $0x8] sm:$0xff]
      %v750 = vld [vmem:[%s747 + $0x10] sm:$0xff]
      %v751 = vld [vmem:[%s747 + $0x18] sm:$0xff]
      %v752 = vld [vmem:[%s747 + $0x20] sm:$0xff]
      %v753 = vld [vmem:[%s747 + $0x28] sm:$0xff]
      %v754 = vld [vmem:[%s747 + $0x30] sm:$0xff]
      %v755 = vld [vmem:[%s747 + $0x38] sm:$0xff]
      %v756 = vld [vmem:[%s747 + $0x40] sm:$0xff]
      %v757 = vld [vmem:[%s747 + $0x48] sm:$0xff]
      %v758 = vld [vmem:[%s747 + $0x50] sm:$0xff]
      %v759 = vld [vmem:[%s747 + $0x58] sm:$0xff]
      %v760 = vld [vmem:[%s747 + $0x60] sm:$0xff]
      %v761 = vld [vmem:[%s747 + $0x68] sm:$0xff]
      %v762 = vld [vmem:[%s747 + $0x70] sm:$0xff]
      %v763 = vld [vmem:[%s747 + $0x78] sm:$0xff]
      %v764 = vld [vmem:[%s747 + $0x80] sm:$0xff]
      %v765 = vld [vmem:[%s747 + $0x88] sm:$0xff]
      %v766 = vld [vmem:[%s747 + $0x90] sm:$0xff]
      %v767 = vld [vmem:[%s747 + $0x98] sm:$0xff]
      %v768 = vld [vmem:[%s747 + $0xa0] sm:$0xff]
      %v769 = vld [vmem:[%s747 + $0xa8] sm:$0xff]
      %v770 = vld [vmem:[%s747 + $0xb0] sm:$0xff]
      %v771 = vld [vmem:[%s747 + $0xb8] sm:$0xff]
      %v772 = vld [vmem:[%s747 + $0xc0] sm:$0xff]
      %v773 = vld [vmem:[%s747 + $0xc8] sm:$0xff]
      %v774 = vld [vmem:[%s747 + $0xd0] sm:$0xff]
      %v775 = vld [vmem:[%s747 + $0xd8] sm:$0xff]
      %v776 = vld [vmem:[%s747 + $0xe0] sm:$0xff]
      %v777 = vld [vmem:[%s747 + $0xe8] sm:$0xff]
      %v778 = vld [vmem:[%s747 + $0xf0] sm:$0xff]
      %v779 = vld [vmem:[%s747 + $0xf8] sm:$0xff]
      %v780 = vld [vmem:[%s747 + $0x100] sm:$0xff]
      %v781 = vld [vmem:[%s747 + $0x108] sm:$0xff]
      %v782 = vld [vmem:[%s747 + $0x110] sm:$0xff]
      %v783 = vld [vmem:[%s747 + $0x118] sm:$0xff]
      %v784 = vld [vmem:[%s747 + $0x120] sm:$0xff]
      %v785 = vld [vmem:[%s747 + $0x128] sm:$0xff]
      %v786 = vld [vmem:[%s747 + $0x130] sm:$0xff]
      %v787 = vld [vmem:[%s747 + $0x138] sm:$0xff]
      %v788 = vld [vmem:[%s747 + $0x140] sm:$0xff]
      %v789 = vld [vmem:[%s747 + $0x148] sm:$0xff]
      %v790 = vld [vmem:[%s747 + $0x150] sm:$0xff]
      %v791 = vld [vmem:[%s747 + $0x158] sm:$0xff]
      %v792 = vld [vmem:[%s747 + $0x160] sm:$0xff]
      %v793 = vld [vmem:[%s747 + $0x168] sm:$0xff]
      %v794 = vld [vmem:[%s747 + $0x170] sm:$0xff]
      %v795 = vld [vmem:[%s747 + $0x178] sm:$0xff]
      %v796 = vld [vmem:[%s747 + $0x180] sm:$0xff]
      %v797 = vld [vmem:[%s747 + $0x188] sm:$0xff]
      %v798 = vld [vmem:[%s747 + $0x190] sm:$0xff]
      %v799 = vld [vmem:[%s747 + $0x198] sm:$0xff]
      %v800 = vld [vmem:[%s747 + $0x1a0] sm:$0xff]
      %v801 = vld [vmem:[%s747 + $0x1a8] sm:$0xff]
      %v802 = vld [vmem:[%s747 + $0x1b0] sm:$0xff]
      %v803 = vld [vmem:[%s747 + $0x1b8] sm:$0xff]
      %v804 = vld [vmem:[%s747 + $0x1c0] sm:$0xff]
      %v805 = vld [vmem:[%s747 + $0x1c8] sm:$0xff]
      %v806 = vld [vmem:[%s747 + $0x1d0] sm:$0xff]
      %v807 = vld [vmem:[%s747 + $0x1d8] sm:$0xff]
      %v808 = vld [vmem:[%s747 + $0x1e0] sm:$0xff]
      %v809 = vld [vmem:[%s747 + $0x1e8] sm:$0xff]
      %v810 = vld [vmem:[%s747 + $0x1f0] sm:$0xff]
      %v811 = vld [vmem:[%s747 + $0x1f8] sm:$0xff]
      %812 = vmatprep.subr.mxu0 %v749
      %813 = vmatpush1.msra.mxu0 %v748
      %814 = vmatprep.subr.mxu0 %v751
      %815 = vmatpush1.msra.mxu0 %v750
      %816 = vmatprep.subr.mxu0 %v753
      %817 = vmatpush1.msra.mxu0 %v752
      %818 = vmatprep.subr.mxu0 %v755
      %819 = vmatpush1.msra.mxu0 %v754
      %820 = vmatprep.subr.mxu0 %v757
      %821 = vmatpush1.msra.mxu0 %v756
      %822 = vmatprep.subr.mxu0 %v759
      %823 = vmatpush1.msra.mxu0 %v758
      %824 = vmatprep.subr.mxu0 %v761
      %825 = vmatpush1.msra.mxu0 %v760
      %826 = vmatprep.subr.mxu0 %v763
      %827 = vmatpush1.msra.mxu0 %v762
      %828 = vmatprep.subr.mxu0 %v765
      %829 = vmatpush1.msra.mxu0 %v764
      %830 = vmatprep.subr.mxu0 %v767
      %831 = vmatpush1.msra.mxu0 %v766
      %832 = vmatprep.subr.mxu0 %v769
      %833 = vmatpush1.msra.mxu0 %v768
      %834 = vmatprep.subr.mxu0 %v771
      %835 = vmatpush1.msra.mxu0 %v770
      %836 = vmatprep.subr.mxu0 %v773
      %837 = vmatpush1.msra.mxu0 %v772
      %838 = vmatprep.subr.mxu0 %v775
      %839 = vmatpush1.msra.mxu0 %v774
      %840 = vmatprep.subr.mxu0 %v777
      %841 = vmatpush1.msra.mxu0 %v776
      %842 = vmatprep.subr.mxu0 %v779
      %843 = vmatpush1.msra.mxu0 %v778
      %844 = vmatprep.subr.mxu0 %v781
      %845 = vmatpush1.msra.mxu0 %v780
      %846 = vmatprep.subr.mxu0 %v783
      %847 = vmatpush1.msra.mxu0 %v782
      %848 = vmatprep.subr.mxu0 %v785
      %849 = vmatpush1.msra.mxu0 %v784
      %850 = vmatprep.subr.mxu0 %v787
      %851 = vmatpush1.msra.mxu0 %v786
      %852 = vmatprep.subr.mxu0 %v789
      %853 = vmatpush1.msra.mxu0 %v788
      %854 = vmatprep.subr.mxu0 %v791
      %855 = vmatpush1.msra.mxu0 %v790
      %856 = vmatprep.subr.mxu0 %v793
      %857 = vmatpush1.msra.mxu0 %v792
      %858 = vmatprep.subr.mxu0 %v795
      %859 = vmatpush1.msra.mxu0 %v794
      %860 = vmatprep.subr.mxu0 %v797
      %861 = vmatpush1.msra.mxu0 %v796
      %862 = vmatprep.subr.mxu0 %v799
      %863 = vmatpush1.msra.mxu0 %v798
      %864 = vmatprep.subr.mxu0 %v801
      %865 = vmatpush1.msra.mxu0 %v800
      %866 = vmatprep.subr.mxu0 %v803
      %867 = vmatpush1.msra.mxu0 %v802
      %868 = vmatprep.subr.mxu0 %v805
      %869 = vmatpush1.msra.mxu0 %v804
      %870 = vmatprep.subr.mxu0 %v807
      %871 = vmatpush1.msra.mxu0 %v806
      %872 = vmatprep.subr.mxu0 %v809
      %873 = vmatpush1.msra.mxu0 %v808
      %874 = vmatprep.subr.mxu0 %v811
      %875 = vmatpush1.msra.mxu0 %v810
      %876 = vmatprep.mubr.f32.mxu0 %v742
      %877 = vmatmul.mubr.f32.gmra.mrb[0].mxu0 %v741
      %v878 = vpop.f32.mrb[0].mxu0
      %v879 = vadd.f32 0.0, %v878
      %v880 = vpop.f32.mrb[0].mxu0
      %v881 = vadd.f32 0.0, %v880
      %882 = vmatprep.mubr.f32.mxu0 %v744
      %883 = vmatmul.mubr.f32.gmra.mrb[0].mxu0 %v743
      %v884 = vpop.f32.mrb[0].mxu0
      %v885 = vadd.f32 0.0, %v884
      %v886 = vpop.f32.mrb[0].mxu0
      %v887 = vadd.f32 0.0, %v886
      %888 = vmatprep.mubr.f32.mxu0 %v746
      %889 = vmatmul.mubr.f32.gmra.mrb[0].mxu0 %v745
      %v890 = vpop.f32.mrb[0].mxu0
      %v891 = vadd.f32 0.0, %v890
      %v892 = vpop.f32.mrb[0].mxu0
      %v893 = vadd.f32 0.0, %v892
      %894 = vdwg.mxu0
      %v895 = vmax.f32 %v741, %v879
      %v896 = vmax.f32 %v742, %v881
      %v897 = vmax.f32 %v743, %v885
      %v898 = vmax.f32 %v744, %v887
      %v899 = vmax.f32 %v745, %v891
      %v900 = vmax.f32 %v746, %v893
      %s901 = scalar_lea.vmem %s3, 1024
      %v902 = vld [vmem:[%s901] sm:$0xff]
      %v903 = vld [vmem:[%s901 + $0x8] sm:$0xff]
      %v904 = vld [vmem:[%s901 + $0x10] sm:$0xff]
      %v905 = vld [vmem:[%s901 + $0x18] sm:$0xff]
      %v906 = vld [vmem:[%s901 + $0x20] sm:$0xff]
      %v907 = vld [vmem:[%s901 + $0x28] sm:$0xff]
      %v908 = vld [vmem:[%s901 + $0x30] sm:$0xff]
      %v909 = vld [vmem:[%s901 + $0x38] sm:$0xff]
      %v910 = vld [vmem:[%s901 + $0x40] sm:$0xff]
      %v911 = vld [vmem:[%s901 + $0x48] sm:$0xff]
      %v912 = vld [vmem:[%s901 + $0x50] sm:$0xff]
      %v913 = vld [vmem:[%s901 + $0x58] sm:$0xff]
      %v914 = vld [vmem:[%s901 + $0x60] sm:$0xff]
      %v915 = vld [vmem:[%s901 + $0x68] sm:$0xff]
      %v916 = vld [vmem:[%s901 + $0x70] sm:$0xff]
      %v917 = vld [vmem:[%s901 + $0x78] sm:$0xff]
      %v918 = vld [vmem:[%s901 + $0x80] sm:$0xff]
      %v919 = vld [vmem:[%s901 + $0x88] sm:$0xff]
      %v920 = vld [vmem:[%s901 + $0x90] sm:$0xff]
      %v921 = vld [vmem:[%s901 + $0x98] sm:$0xff]
      %v922 = vld [vmem:[%s901 + $0xa0] sm:$0xff]
      %v923 = vld [vmem:[%s901 + $0xa8] sm:$0xff]
      %v924 = vld [vmem:[%s901 + $0xb0] sm:$0xff]
      %v925 = vld [vmem:[%s901 + $0xb8] sm:$0xff]
      %v926 = vld [vmem:[%s901 + $0xc0] sm:$0xff]
      %v927 = vld [vmem:[%s901 + $0xc8] sm:$0xff]
      %v928 = vld [vmem:[%s901 + $0xd0] sm:$0xff]
      %v929 = vld [vmem:[%s901 + $0xd8] sm:$0xff]
      %v930 = vld [vmem:[%s901 + $0xe0] sm:$0xff]
      %v931 = vld [vmem:[%s901 + $0xe8] sm:$0xff]
      %v932 = vld [vmem:[%s901 + $0xf0] sm:$0xff]
      %v933 = vld [vmem:[%s901 + $0xf8] sm:$0xff]
      %v934 = vld [vmem:[%s901 + $0x100] sm:$0xff]
      %v935 = vld [vmem:[%s901 + $0x108] sm:$0xff]
      %v936 = vld [vmem:[%s901 + $0x110] sm:$0xff]
      %v937 = vld [vmem:[%s901 + $0x118] sm:$0xff]
      %v938 = vld [vmem:[%s901 + $0x120] sm:$0xff]
      %v939 = vld [vmem:[%s901 + $0x128] sm:$0xff]
      %v940 = vld [vmem:[%s901 + $0x130] sm:$0xff]
      %v941 = vld [vmem:[%s901 + $0x138] sm:$0xff]
      %v942 = vld [vmem:[%s901 + $0x140] sm:$0xff]
      %v943 = vld [vmem:[%s901 + $0x148] sm:$0xff]
      %v944 = vld [vmem:[%s901 + $0x150] sm:$0xff]
      %v945 = vld [vmem:[%s901 + $0x158] sm:$0xff]
      %v946 = vld [vmem:[%s901 + $0x160] sm:$0xff]
      %v947 = vld [vmem:[%s901 + $0x168] sm:$0xff]
      %v948 = vld [vmem:[%s901 + $0x170] sm:$0xff]
      %v949 = vld [vmem:[%s901 + $0x178] sm:$0xff]
      %v950 = vld [vmem:[%s901 + $0x180] sm:$0xff]
      %v951 = vld [vmem:[%s901 + $0x188] sm:$0xff]
      %v952 = vld [vmem:[%s901 + $0x190] sm:$0xff]
      %v953 = vld [vmem:[%s901 + $0x198] sm:$0xff]
      %v954 = vld [vmem:[%s901 + $0x1a0] sm:$0xff]
      %v955 = vld [vmem:[%s901 + $0x1a8] sm:$0xff]
      %v956 = vld [vmem:[%s901 + $0x1b0] sm:$0xff]
      %v957 = vld [vmem:[%s901 + $0x1b8] sm:$0xff]
      %v958 = vld [vmem:[%s901 + $0x1c0] sm:$0xff]
      %v959 = vld [vmem:[%s901 + $0x1c8] sm:$0xff]
      %v960 = vld [vmem:[%s901 + $0x1d0] sm:$0xff]
      %v961 = vld [vmem:[%s901 + $0x1d8] sm:$0xff]
      %v962 = vld [vmem:[%s901 + $0x1e0] sm:$0xff]
      %v963 = vld [vmem:[%s901 + $0x1e8] sm:$0xff]
      %v964 = vld [vmem:[%s901 + $0x1f0] sm:$0xff]
      %v965 = vld [vmem:[%s901 + $0x1f8] sm:$0xff]
      %966 = vmatprep.subr.mxu0 %v903
      %967 = vmatpush1.msra.mxu0 %v902
      %968 = vmatprep.subr.mxu0 %v905
      %969 = vmatpush1.msra.mxu0 %v904
      %970 = vmatprep.subr.mxu0 %v907
      %971 = vmatpush1.msra.mxu0 %v906
      %972 = vmatprep.subr.mxu0 %v909
      %973 = vmatpush1.msra.mxu0 %v908
      %974 = vmatprep.subr.mxu0 %v911
      %975 = vmatpush1.msra.mxu0 %v910
      %976 = vmatprep.subr.mxu0 %v913
      %977 = vmatpush1.msra.mxu0 %v912
      %978 = vmatprep.subr.mxu0 %v915
      %979 = vmatpush1.msra.mxu0 %v914
      %980 = vmatprep.subr.mxu0 %v917
      %981 = vmatpush1.msra.mxu0 %v916
      %982 = vmatprep.subr.mxu0 %v919
      %983 = vmatpush1.msra.mxu0 %v918
      %984 = vmatprep.subr.mxu0 %v921
      %985 = vmatpush1.msra.mxu0 %v920
      %986 = vmatprep.subr.mxu0 %v923
      %987 = vmatpush1.msra.mxu0 %v922
      %988 = vmatprep.subr.mxu0 %v925
      %989 = vmatpush1.msra.mxu0 %v924
      %990 = vmatprep.subr.mxu0 %v927
      %991 = vmatpush1.msra.mxu0 %v926
      %992 = vmatprep.subr.mxu0 %v929
      %993 = vmatpush1.msra.mxu0 %v928
      %994 = vmatprep.subr.mxu0 %v931
      %995 = vmatpush1.msra.mxu0 %v930
      %996 = vmatprep.subr.mxu0 %v933
      %997 = vmatpush1.msra.mxu0 %v932
      %998 = vmatprep.subr.mxu0 %v935
      %999 = vmatpush1.msra.mxu0 %v934
      %1000 = vmatprep.subr.mxu0 %v937
      %1001 = vmatpush1.msra.mxu0 %v936
      %1002 = vmatprep.subr.mxu0 %v939
      %1003 = vmatpush1.msra.mxu0 %v938
      %1004 = vmatprep.subr.mxu0 %v941
      %1005 = vmatpush1.msra.mxu0 %v940
      %1006 = vmatprep.subr.mxu0 %v943
      %1007 = vmatpush1.msra.mxu0 %v942
      %1008 = vmatprep.subr.mxu0 %v945
      %1009 = vmatpush1.msra.mxu0 %v944
      %1010 = vmatprep.subr.mxu0 %v947
      %1011 = vmatpush1.msra.mxu0 %v946
      %1012 = vmatprep.subr.mxu0 %v949
      %1013 = vmatpush1.msra.mxu0 %v948
      %1014 = vmatprep.subr.mxu0 %v951
      %1015 = vmatpush1.msra.mxu0 %v950
      %1016 = vmatprep.subr.mxu0 %v953
      %1017 = vmatpush1.msra.mxu0 %v952
      %1018 = vmatprep.subr.mxu0 %v955
      %1019 = vmatpush1.msra.mxu0 %v954
      %1020 = vmatprep.subr.mxu0 %v957
      %1021 = vmatpush1.msra.mxu0 %v956
      %1022 = vmatprep.subr.mxu0 %v959
      %1023 = vmatpush1.msra.mxu0 %v958
      %1024 = vmatprep.subr.mxu0 %v961
      %1025 = vmatpush1.msra.mxu0 %v960
      %1026 = vmatprep.subr.mxu0 %v963
      %1027 = vmatpush1.msra.mxu0 %v962
      %1028 = vmatprep.subr.mxu0 %v965
      %1029 = vmatpush1.msra.mxu0 %v964
      %1030 = vmatprep.mubr.f32.mxu0 %v896
      %1031 = vmatmul.mubr.f32.gmra.mrb[0].mxu0 %v895
      %v1032 = vpop.f32.mrb[0].mxu0
      %v1033 = vadd.f32 0.0, %v1032
      %v1034 = vpop.f32.mrb[0].mxu0
      %v1035 = vadd.f32 0.0, %v1034
      %1036 = vmatprep.mubr.f32.mxu0 %v898
      %1037 = vmatmul.mubr.f32.gmra.mrb[0].mxu0 %v897
      %v1038 = vpop.f32.mrb[0].mxu0
      %v1039 = vadd.f32 0.0, %v1038
      %v1040 = vpop.f32.mrb[0].mxu0
      %v1041 = vadd.f32 0.0, %v1040
      %1042 = vmatprep.mubr.f32.mxu0 %v900
      %1043 = vmatmul.mubr.f32.gmra.mrb[0].mxu0 %v899
      %v1044 = vpop.f32.mrb[0].mxu0
      %v1045 = vadd.f32 0.0, %v1044
      %v1046 = vpop.f32.mrb[0].mxu0
      %v1047 = vadd.f32 0.0, %v1046
      %1048 = vdwg.mxu0
      %v1049 = vmax.f32 %v895, %v1033
      %v1050 = vmax.f32 %v896, %v1035
      %v1051 = vmax.f32 %v897, %v1039
      %v1052 = vmax.f32 %v898, %v1041
      %v1053 = vmax.f32 %v899, %v1045
      %v1054 = vmax.f32 %v900, %v1047
      %s1055 = scalar_lea.vmem %s3, 1536
      %v1056 = vld [vmem:[%s1055] sm:$0xff]
      %v1057 = vld [vmem:[%s1055 + $0x8] sm:$0xff]
      %v1058 = vld [vmem:[%s1055 + $0x10] sm:$0xff]
      %v1059 = vld [vmem:[%s1055 + $0x18] sm:$0xff]
      %v1060 = vld [vmem:[%s1055 + $0x20] sm:$0xff]
      %v1061 = vld [vmem:[%s1055 + $0x28] sm:$0xff]
      %v1062 = vld [vmem:[%s1055 + $0x30] sm:$0xff]
      %v1063 = vld [vmem:[%s1055 + $0x38] sm:$0xff]
      %v1064 = vld [vmem:[%s1055 + $0x40] sm:$0xff]
      %v1065 = vld [vmem:[%s1055 + $0x48] sm:$0xff]
      %v1066 = vld [vmem:[%s1055 + $0x50] sm:$0xff]
      %v1067 = vld [vmem:[%s1055 + $0x58] sm:$0xff]
      %v1068 = vld [vmem:[%s1055 + $0x60] sm:$0xff]
      %v1069 = vld [vmem:[%s1055 + $0x68] sm:$0xff]
      %v1070 = vld [vmem:[%s1055 + $0x70] sm:$0xff]
      %v1071 = vld [vmem:[%s1055 + $0x78] sm:$0xff]
      %v1072 = vld [vmem:[%s1055 + $0x80] sm:$0xff]
      %v1073 = vld [vmem:[%s1055 + $0x88] sm:$0xff]
      %v1074 = vld [vmem:[%s1055 + $0x90] sm:$0xff]
      %v1075 = vld [vmem:[%s1055 + $0x98] sm:$0xff]
      %v1076 = vld [vmem:[%s1055 + $0xa0] sm:$0xff]
      %v1077 = vld [vmem:[%s1055 + $0xa8] sm:$0xff]
      %v1078 = vld [vmem:[%s1055 + $0xb0] sm:$0xff]
      %v1079 = vld [vmem:[%s1055 + $0xb8] sm:$0xff]
      %v1080 = vld [vmem:[%s1055 + $0xc0] sm:$0xff]
      %v1081 = vld [vmem:[%s1055 + $0xc8] sm:$0xff]
      %v1082 = vld [vmem:[%s1055 + $0xd0] sm:$0xff]
      %v1083 = vld [vmem:[%s1055 + $0xd8] sm:$0xff]
      %v1084 = vld [vmem:[%s1055 + $0xe0] sm:$0xff]
      %v1085 = vld [vmem:[%s1055 + $0xe8] sm:$0xff]
      %v1086 = vld [vmem:[%s1055 + $0xf0] sm:$0xff]
      %v1087 = vld [vmem:[%s1055 + $0xf8] sm:$0xff]
      %v1088 = vld [vmem:[%s1055 + $0x100] sm:$0xff]
      %v1089 = vld [vmem:[%s1055 + $0x108] sm:$0xff]
      %v1090 = vld [vmem:[%s1055 + $0x110] sm:$0xff]
      %v1091 = vld [vmem:[%s1055 + $0x118] sm:$0xff]
      %v1092 = vld [vmem:[%s1055 + $0x120] sm:$0xff]
      %v1093 = vld [vmem:[%s1055 + $0x128] sm:$0xff]
      %v1094 = vld [vmem:[%s1055 + $0x130] sm:$0xff]
      %v1095 = vld [vmem:[%s1055 + $0x138] sm:$0xff]
      %v1096 = vld [vmem:[%s1055 + $0x140] sm:$0xff]
      %v1097 = vld [vmem:[%s1055 + $0x148] sm:$0xff]
      %v1098 = vld [vmem:[%s1055 + $0x150] sm:$0xff]
      %v1099 = vld [vmem:[%s1055 + $0x158] sm:$0xff]
      %v1100 = vld [vmem:[%s1055 + $0x160] sm:$0xff]
      %v1101 = vld [vmem:[%s1055 + $0x168] sm:$0xff]
      %v1102 = vld [vmem:[%s1055 + $0x170] sm:$0xff]
      %v1103 = vld [vmem:[%s1055 + $0x178] sm:$0xff]
      %v1104 = vld [vmem:[%s1055 + $0x180] sm:$0xff]
      %v1105 = vld [vmem:[%s1055 + $0x188] sm:$0xff]
      %v1106 = vld [vmem:[%s1055 + $0x190] sm:$0xff]
      %v1107 = vld [vmem:[%s1055 + $0x198] sm:$0xff]
      %v1108 = vld [vmem:[%s1055 + $0x1a0] sm:$0xff]
      %v1109 = vld [vmem:[%s1055 + $0x1a8] sm:$0xff]
      %v1110 = vld [vmem:[%s1055 + $0x1b0] sm:$0xff]
      %v1111 = vld [vmem:[%s1055 + $0x1b8] sm:$0xff]
      %v1112 = vld [vmem:[%s1055 + $0x1c0] sm:$0xff]
      %v1113 = vld [vmem:[%s1055 + $0x1c8] sm:$0xff]
      %v1114 = vld [vmem:[%s1055 + $0x1d0] sm:$0xff]
      %v1115 = vld [vmem:[%s1055 + $0x1d8] sm:$0xff]
      %v1116 = vld [vmem:[%s1055 + $0x1e0] sm:$0xff]
      %v1117 = vld [vmem:[%s1055 + $0x1e8] sm:$0xff]
      %v1118 = vld [vmem:[%s1055 + $0x1f0] sm:$0xff]
      %v1119 = vld [vmem:[%s1055 + $0x1f8] sm:$0xff]
      %1120 = vmatprep.subr.mxu0 %v1057
      %1121 = vmatpush1.msra.mxu0 %v1056
      %1122 = vmatprep.subr.mxu0 %v1059
      %1123 = vmatpush1.msra.mxu0 %v1058
      %1124 = vmatprep.subr.mxu0 %v1061
      %1125 = vmatpush1.msra.mxu0 %v1060
      %1126 = vmatprep.subr.mxu0 %v1063
      %1127 = vmatpush1.msra.mxu0 %v1062
      %1128 = vmatprep.subr.mxu0 %v1065
      %1129 = vmatpush1.msra.mxu0 %v1064
      %1130 = vmatprep.subr.mxu0 %v1067
      %1131 = vmatpush1.msra.mxu0 %v1066
      %1132 = vmatprep.subr.mxu0 %v1069
      %1133 = vmatpush1.msra.mxu0 %v1068
      %1134 = vmatprep.subr.mxu0 %v1071
      %1135 = vmatpush1.msra.mxu0 %v1070
      %1136 = vmatprep.subr.mxu0 %v1073
      %1137 = vmatpush1.msra.mxu0 %v1072
      %1138 = vmatprep.subr.mxu0 %v1075
      %1139 = vmatpush1.msra.mxu0 %v1074
      %1140 = vmatprep.subr.mxu0 %v1077
      %1141 = vmatpush1.msra.mxu0 %v1076
      %1142 = vmatprep.subr.mxu0 %v1079
      %1143 = vmatpush1.msra.mxu0 %v1078
      %1144 = vmatprep.subr.mxu0 %v1081
      %1145 = vmatpush1.msra.mxu0 %v1080
      %1146 = vmatprep.subr.mxu0 %v1083
      %1147 = vmatpush1.msra.mxu0 %v1082
      %1148 = vmatprep.subr.mxu0 %v1085
      %1149 = vmatpush1.msra.mxu0 %v1084
      %1150 = vmatprep.subr.mxu0 %v1087
      %1151 = vmatpush1.msra.mxu0 %v1086
      %1152 = vmatprep.subr.mxu0 %v1089
      %1153 = vmatpush1.msra.mxu0 %v1088
      %1154 = vmatprep.subr.mxu0 %v1091
      %1155 = vmatpush1.msra.mxu0 %v1090
      %1156 = vmatprep.subr.mxu0 %v1093
      %1157 = vmatpush1.msra.mxu0 %v1092
      %1158 = vmatprep.subr.mxu0 %v1095
      %1159 = vmatpush1.msra.mxu0 %v1094
      %1160 = vmatprep.subr.mxu0 %v1097
      %1161 = vmatpush1.msra.mxu0 %v1096
      %1162 = vmatprep.subr.mxu0 %v1099
      %1163 = vmatpush1.msra.mxu0 %v1098
      %1164 = vmatprep.subr.mxu0 %v1101
      %1165 = vmatpush1.msra.mxu0 %v1100
      %1166 = vmatprep.subr.mxu0 %v1103
      %1167 = vmatpush1.msra.mxu0 %v1102
      %1168 = vmatprep.subr.mxu0 %v1105
      %1169 = vmatpush1.msra.mxu0 %v1104
      %1170 = vmatprep.subr.mxu0 %v1107
      %1171 = vmatpush1.msra.mxu0 %v1106
      %1172 = vmatprep.subr.mxu0 %v1109
      %1173 = vmatpush1.msra.mxu0 %v1108
      %1174 = vmatprep.subr.mxu0 %v1111
      %1175 = vmatpush1.msra.mxu0 %v1110
      %1176 = vmatprep.subr.mxu0 %v1113
      %1177 = vmatpush1.msra.mxu0 %v1112
      %1178 = vmatprep.subr.mxu0 %v1115
      %1179 = vmatpush1.msra.mxu0 %v1114
      %1180 = vmatprep.subr.mxu0 %v1117
      %1181 = vmatpush1.msra.mxu0 %v1116
      %1182 = vmatprep.subr.mxu0 %v1119
      %1183 = vmatpush1.msra.mxu0 %v1118
      %1184 = vmatprep.mubr.f32.mxu0 %v1050
      %1185 = vmatmul.mubr.f32.gmra.mrb[0].mxu0 %v1049
      %v1186 = vpop.f32.mrb[0].mxu0
      %v1187 = vadd.f32 0.0, %v1186
      %v1188 = vpop.f32.mrb[0].mxu0
      %v1189 = vadd.f32 0.0, %v1188
      %1190 = vmatprep.mubr.f32.mxu0 %v1052
      %1191 = vmatmul.mubr.f32.gmra.mrb[0].mxu0 %v1051
      %v1192 = vpop.f32.mrb[0].mxu0
      %v1193 = vadd.f32 0.0, %v1192
      %v1194 = vpop.f32.mrb[0].mxu0
      %v1195 = vadd.f32 0.0, %v1194
      %1196 = vmatprep.mubr.f32.mxu0 %v1054
      %1197 = vmatmul.mubr.f32.gmra.mrb[0].mxu0 %v1053
      %v1198 = vpop.f32.mrb[0].mxu0
      %v1199 = vadd.f32 0.0, %v1198
      %v1200 = vpop.f32.mrb[0].mxu0
      %v1201 = vadd.f32 0.0, %v1200
      %1202 = vdwg.mxu0
      %v1203 = vmax.f32 %v1049, %v1187
      %v1204 = vmax.f32 %v1050, %v1189
      %v1205 = vmax.f32 %v1051, %v1193
      %v1206 = vmax.f32 %v1052, %v1195
      %v1207 = vmax.f32 %v1053, %v1199
      %v1208 = vmax.f32 %v1054, %v1201
      %v1209 = vld [vmem:[%s4] sm:$0xff]
      %v1210 = vld [vmem:[%s4 + $0x8] sm:$0xff]
      %v1211 = vld [vmem:[%s4 + $0x10] sm:$0xff]
      %v1212 = vld [vmem:[%s5] sm:$0xff]
      %v1213 = vld [vmem:[%s5 + $0x8] sm:$0xff]
      %v1214 = vld [vmem:[%s5 + $0x10] sm:$0xff]
      %1216 = vset.pattern.permute.xlu0 0
      %1217 = vperm.xlu0 %1216, %v1212
      %v1218 = vpop.permute.xlu0 %1217
      %1221 = vset.pattern.permute.xlu0 0
      %1222 = vperm.xlu0 %1221, %v1213
      %v1223 = vpop.permute.xlu0 %1222
      %1226 = vset.pattern.permute.xlu0 0
      %1227 = vperm.xlu0 %1226, %v1214
      %v1228 = vpop.permute.xlu0 %1227
      %vm1230 = vcmask 588800
      %v1232 = vsel %vm1230, %v1209, 0
      %v1235 = vsel %vm1230, %v1210, 0
      %v1238 = vsel %vm1230, %v1211, 0
      %1240 = vmatprep.subr.mxu0 %v589
      %1241 = vmatpush1.msra.mxu0 %v588
      %1242 = vmatprep.subr.mxu0 %v591
      %1243 = vmatpush1.msra.mxu0 %v590
      %1244 = vmatprep.subr.mxu0 %v593
      %1245 = vmatpush1.msra.mxu0 %v592
      %1246 = vmatprep.subr.mxu0 %v896
      %1247 = vmatpush1.msra.mxu0 %v895
      %1248 = vmatprep.subr.mxu0 %v898
      %1249 = vmatpush1.msra.mxu0 %v897
      %1250 = vmatprep.subr.mxu0 %v900
      %1251 = vmatpush1.msra.mxu0 %v899
      %1252 = vmatprep.subr.mxu0 %v1204
      %1253 = vmatpush1.msra.mxu0 %v1203
      %1254 = vmatprep.subr.mxu0 %v1206
      %1255 = vmatpush1.msra.mxu0 %v1205
      %1256 = vmatprep.subr.mxu0 %v1208
      %1257 = vmatpush1.msra.mxu0 %v1207
      %1258 = vmatprep.subr.mxu0 0.0
      %1259 = vmatpush1.msra.mxu0 0.0
      %1260 = vmatprep.subr.mxu0 0.0
      %1261 = vmatpush1.msra.mxu0 0.0
      %1262 = vmatprep.subr.mxu0 0.0
      %1263 = vmatpush1.msra.mxu0 0.0
      %1264 = vmatprep.subr.mxu0 0.0
      %1265 = vmatpush1.msra.mxu0 0.0
      %1266 = vmatprep.subr.mxu0 0.0
      %1267 = vmatpush1.msra.mxu0 0.0
      %1268 = vmatprep.subr.mxu0 0.0
      %1269 = vmatpush1.msra.mxu0 0.0
      %1270 = vmatprep.subr.mxu0 0.0
      %1271 = vmatpush1.msra.mxu0 0.0
      %1272 = vmatprep.subr.mxu0 0.0
      %1273 = vmatpush1.msra.mxu0 0.0
      %1274 = vmatprep.subr.mxu0 0.0
      %1275 = vmatpush1.msra.mxu0 0.0
      %1276 = vmatprep.subr.mxu0 0.0
      %1277 = vmatpush1.msra.mxu0 0.0
      %1278 = vmatprep.subr.mxu0 0.0
      %1279 = vmatpush1.msra.mxu0 0.0
      %1280 = vmatprep.subr.mxu0 0.0
      %1281 = vmatpush1.msra.mxu0 0.0
      %1282 = vmatprep.subr.mxu0 0.0
      %1283 = vmatpush1.msra.mxu0 0.0
      %1284 = vmatprep.subr.mxu0 0.0
      %1285 = vmatpush1.msra.mxu0 0.0
      %1286 = vmatprep.subr.mxu0 0.0
      %1287 = vmatpush1.msra.mxu0 0.0
      %1288 = vmatprep.subr.mxu0 0.0
      %1289 = vmatpush1.msra.mxu0 0.0
      %1290 = vmatprep.subr.mxu0 0.0
      %1291 = vmatpush1.msra.mxu0 0.0
      %1292 = vmatprep.subr.mxu0 0.0
      %1293 = vmatpush1.msra.mxu0 0.0
      %1294 = vmatprep.subr.mxu0 0.0
      %1295 = vmatpush1.msra.mxu0 0.0
      %1296 = vmatprep.subr.mxu0 0.0
      %1297 = vmatpush1.msra.mxu0 0.0
      %1298 = vmatprep.subr.mxu0 0.0
      %1299 = vmatpush1.msra.mxu0 0.0
      %1300 = vmatprep.subr.mxu0 0.0
      %1301 = vmatpush1.msra.mxu0 0.0
      %1302 = vmatprep.subr.mxu0 0.0
      %1303 = vmatpush1.msra.mxu0 0.0
      %1304 = vmatprep.mubr.f32.mxu0 0.0
      %1305 = vmatmul.mubr.f32.gmra.mrb[0].mxu0 %v1232
      %v1306 = vpop.f32.mrb[0].mxu0
      %v1307 = vadd.f32 %v1218, %v1306
      %v1308 = vpop.f32.mrb[0].mxu0
      %v1309 = vadd.f32 %v1218, %v1308
      %1310 = vmatprep.mubr.f32.mxu0 0.0
      %1311 = vmatmul.mubr.f32.gmra.mrb[0].mxu0 %v1235
      %v1312 = vpop.f32.mrb[0].mxu0
      %v1313 = vadd.f32 %v1223, %v1312
      %v1314 = vpop.f32.mrb[0].mxu0
      %v1315 = vadd.f32 %v1223, %v1314
      %1316 = vmatprep.mubr.f32.mxu0 0.0
      %1317 = vmatmul.mubr.f32.gmra.mrb[0].mxu0 %v1238
      %v1318 = vpop.f32.mrb[0].mxu0
      %v1319 = vadd.f32 %v1228, %v1318
      %v1320 = vpop.f32.mrb[0].mxu0
      %v1321 = vadd.f32 %v1228, %v1320
      %1322 = vdwg.mxu0
      %v1323 = vmax.f32 %v1307, 0.0
      %v1324 = vmax.f32 %v1309, 0.0
      %v1325 = vmax.f32 %v1313, 0.0
      %v1326 = vmax.f32 %v1315, 0.0
      %v1327 = vmax.f32 %v1319, 0.0
      %v1328 = vmax.f32 %v1321, 0.0
      %v1329 = vsub.f32 %v1323, %v1327
      %v1330 = vsub.f32 %v1324, %v1328
      %v1331 = vsub.f32 %v1325, %v1327
      %v1332 = vsub.f32 %v1326, %v1328
      %v1333 = vld [vmem:[%s8] sm:$0xff]
      %v1334 = vld [vmem:[%s8 + $0x8] sm:$0xff]
      %v1335 = vld [vmem:[%s9] sm:$0xff]
      %v1336 = vld [vmem:[%s9 + $0x8] sm:$0xff]
      %1338 = vset.pattern.permute.xlu0 0
      %1339 = vperm.xlu0 %1338, %v1335
      %v1340 = vpop.permute.xlu0 %1339
      %1343 = vset.pattern.permute.xlu0 0
      %1344 = vperm.xlu0 %1343, %v1336
      %v1345 = vpop.permute.xlu0 %1344
      %vm1347 = vcmask 130048
      %v1349 = vsel %vm1347, %v1333, 0
      %v1352 = vsel %vm1347, %v1334, 0
      %1354 = vmatprep.subr.mxu0 %v1330
      %1355 = vmatpush1.msra.mxu0 %v1329
      %1356 = vmatprep.subr.mxu0 %v1332
      %1357 = vmatpush1.msra.mxu0 %v1331
      %1358 = vmatprep.subr.mxu0 0.0
      %1359 = vmatpush1.msra.mxu0 0.0
      %1360 = vmatprep.subr.mxu0 0.0
      %1361 = vmatpush1.msra.mxu0 0.0
      %1362 = vmatprep.subr.mxu0 0.0
      %1363 = vmatpush1.msra.mxu0 0.0
      %1364 = vmatprep.subr.mxu0 0.0
      %1365 = vmatpush1.msra.mxu0 0.0
      %1366 = vmatprep.subr.mxu0 0.0
      %1367 = vmatpush1.msra.mxu0 0.0
      %1368 = vmatprep.subr.mxu0 0.0
      %1369 = vmatpush1.msra.mxu0 0.0
      %1370 = vmatprep.subr.mxu0 0.0
      %1371 = vmatpush1.msra.mxu0 0.0
      %1372 = vmatprep.subr.mxu0 0.0
      %1373 = vmatpush1.msra.mxu0 0.0
      %1374 = vmatprep.subr.mxu0 0.0
      %1375 = vmatpush1.msra.mxu0 0.0
      %1376 = vmatprep.subr.mxu0 0.0
      %1377 = vmatpush1.msra.mxu0 0.0
      %1378 = vmatprep.subr.mxu0 0.0
      %1379 = vmatpush1.msra.mxu0 0.0
      %1380 = vmatprep.subr.mxu0 0.0
      %1381 = vmatpush1.msra.mxu0 0.0
      %1382 = vmatprep.subr.mxu0 0.0
      %1383 = vmatpush1.msra.mxu0 0.0
      %1384 = vmatprep.subr.mxu0 0.0
      %1385 = vmatpush1.msra.mxu0 0.0
      %1386 = vmatprep.subr.mxu0 0.0
      %1387 = vmatpush1.msra.mxu0 0.0
      %1388 = vmatprep.subr.mxu0 0.0
      %1389 = vmatpush1.msra.mxu0 0.0
      %1390 = vmatprep.subr.mxu0 0.0
      %1391 = vmatpush1.msra.mxu0 0.0
      %1392 = vmatprep.subr.mxu0 0.0
      %1393 = vmatpush1.msra.mxu0 0.0
      %1394 = vmatprep.subr.mxu0 0.0
      %1395 = vmatpush1.msra.mxu0 0.0
      %1396 = vmatprep.subr.mxu0 0.0
      %1397 = vmatpush1.msra.mxu0 0.0
      %1398 = vmatprep.subr.mxu0 0.0
      %1399 = vmatpush1.msra.mxu0 0.0
      %1400 = vmatprep.subr.mxu0 0.0
      %1401 = vmatpush1.msra.mxu0 0.0
      %1402 = vmatprep.subr.mxu0 0.0
      %1403 = vmatpush1.msra.mxu0 0.0
      %1404 = vmatprep.subr.mxu0 0.0
      %1405 = vmatpush1.msra.mxu0 0.0
      %1406 = vmatprep.subr.mxu0 0.0
      %1407 = vmatpush1.msra.mxu0 0.0
      %1408 = vmatprep.subr.mxu0 0.0
      %1409 = vmatpush1.msra.mxu0 0.0
      %1410 = vmatprep.subr.mxu0 0.0
      %1411 = vmatpush1.msra.mxu0 0.0
      %1412 = vmatprep.subr.mxu0 0.0
      %1413 = vmatpush1.msra.mxu0 0.0
      %1414 = vmatprep.subr.mxu0 0.0
      %1415 = vmatpush1.msra.mxu0 0.0
      %1416 = vmatprep.subr.mxu0 0.0
      %1417 = vmatpush1.msra.mxu0 0.0
      %1418 = vmatprep.mubr.f32.mxu0 0.0
      %1419 = vmatmul.mubr.f32.gmra.mrb[0].mxu0 %v1349
      %v1420 = vpop.f32.mrb[0].mxu0
      %v1421 = vadd.f32 %v1340, %v1420
      %v1422 = vpop.f32.mrb[0].mxu0
      %v1423 = vadd.f32 %v1340, %v1422
      %1424 = vmatprep.mubr.f32.mxu0 0.0
      %1425 = vmatmul.mubr.f32.gmra.mrb[0].mxu0 %v1352
      %v1426 = vpop.f32.mrb[0].mxu0
      %v1427 = vadd.f32 %v1345, %v1426
      %v1428 = vpop.f32.mrb[0].mxu0
      %v1429 = vadd.f32 %v1345, %v1428
      %1430 = vdwg.mxu0
      %v1431 = vsub.f32 0.0, %v1421
      %v1432 = vsub.f32 0.0, %v1423
      %v1433 = vsub.f32 0.0, %v1427
      %v1434 = vsub.f32 0.0, %v1429
      %v1435 = vmul.f32 %v1431, 1.442695
      %v1436 = vpow.pop %v1435
      %v1437 = vmul.f32 %v1432, 1.442695
      %v1438 = vpow.pop %v1437
      %v1439 = vmul.f32 %v1433, 1.442695
      %v1440 = vpow.pop %v1439
      %v1441 = vmul.f32 %v1434, 1.442695
      %v1442 = vpow.pop %v1441
      %v1443 = vadd.f32 %v1436, 1.0
      %v1444 = vadd.f32 %v1438, 1.0
      %v1445 = vadd.f32 %v1440, 1.0
      %v1446 = vadd.f32 %v1442, 1.0
      %v1447 = vrcp.pop %v1443
      %v1448 = vmul.f32 1.0, %v1447
      %v1449 = vrcp.pop %v1444
      %v1450 = vmul.f32 1.0, %v1449
      %v1451 = vrcp.pop %v1445
      %v1452 = vmul.f32 1.0, %v1451
      %v1453 = vrcp.pop %v1446
      %v1454 = vmul.f32 1.0, %v1453
      %v1455 = vmul.f32 %v1329, %v1448
      %v1456 = vmul.f32 %v1330, %v1450
      %v1457 = vadd.f32 %v592, %v1455
      %v1458 = vadd.f32 %v593, %v1456
      %v1459 = vmul.f32 %v1331, %v1452
      %v1460 = vmul.f32 %v1332, %v1454
      %v1461 = vadd.f32 %v1457, %v1459
      %v1462 = vadd.f32 %v1458, %v1460
      %1463 = vmatprep.subr.mxu0 %v595
      %1464 = vmatpush1.msra.mxu0 %v594
      %1465 = vmatprep.subr.mxu0 %v597
      %1466 = vmatpush1.msra.mxu0 %v596
      %1467 = vmatprep.subr.mxu0 %v599
      %1468 = vmatpush1.msra.mxu0 %v598
      %1469 = vmatprep.subr.mxu0 %v601
      %1470 = vmatpush1.msra.mxu0 %v600
      %1471 = vmatprep.subr.mxu0 %v603
      %1472 = vmatpush1.msra.mxu0 %v602
      %1473 = vmatprep.subr.mxu0 %v605
      %1474 = vmatpush1.msra.mxu0 %v604
      %1475 = vmatprep.subr.mxu0 %v607
      %1476 = vmatpush1.msra.mxu0 %v606
      %1477 = vmatprep.subr.mxu0 %v609
      %1478 = vmatpush1.msra.mxu0 %v608
      %1479 = vmatprep.subr.mxu0 %v611
      %1480 = vmatpush1.msra.mxu0 %v610
      %1481 = vmatprep.subr.mxu0 %v613
      %1482 = vmatpush1.msra.mxu0 %v612
      %1483 = vmatprep.subr.mxu0 %v615
      %1484 = vmatpush1.msra.mxu0 %v614
      %1485 = vmatprep.subr.mxu0 %v617
      %1486 = vmatpush1.msra.mxu0 %v616
      %1487 = vmatprep.subr.mxu0 %v619
      %1488 = vmatpush1.msra.mxu0 %v618
      %1489 = vmatprep.subr.mxu0 %v621
      %1490 = vmatpush1.msra.mxu0 %v620
      %1491 = vmatprep.subr.mxu0 %v623
      %1492 = vmatpush1.msra.mxu0 %v622
      %1493 = vmatprep.subr.mxu0 %v625
      %1494 = vmatpush1.msra.mxu0 %v624
      %1495 = vmatprep.subr.mxu0 %v627
      %1496 = vmatpush1.msra.mxu0 %v626
      %1497 = vmatprep.subr.mxu0 %v629
      %1498 = vmatpush1.msra.mxu0 %v628
      %1499 = vmatprep.subr.mxu0 %v631
      %1500 = vmatpush1.msra.mxu0 %v630
      %1501 = vmatprep.subr.mxu0 %v633
      %1502 = vmatpush1.msra.mxu0 %v632
      %1503 = vmatprep.subr.mxu0 %v635
      %1504 = vmatpush1.msra.mxu0 %v634
      %1505 = vmatprep.subr.mxu0 %v637
      %1506 = vmatpush1.msra.mxu0 %v636
      %1507 = vmatprep.subr.mxu0 %v639
      %1508 = vmatpush1.msra.mxu0 %v638
      %1509 = vmatprep.subr.mxu0 %v641
      %1510 = vmatpush1.msra.mxu0 %v640
      %1511 = vmatprep.subr.mxu0 %v643
      %1512 = vmatpush1.msra.mxu0 %v642
      %1513 = vmatprep.subr.mxu0 %v645
      %1514 = vmatpush1.msra.mxu0 %v644
      %1515 = vmatprep.subr.mxu0 %v647
      %1516 = vmatpush1.msra.mxu0 %v646
      %1517 = vmatprep.subr.mxu0 %v649
      %1518 = vmatpush1.msra.mxu0 %v648
      %1519 = vmatprep.subr.mxu0 %v651
      %1520 = vmatpush1.msra.mxu0 %v650
      %1521 = vmatprep.subr.mxu0 %v653
      %1522 = vmatpush1.msra.mxu0 %v652
      %1523 = vmatprep.subr.mxu0 %v655
      %1524 = vmatpush1.msra.mxu0 %v654
      %1525 = vmatprep.subr.mxu0 %v657
      %1526 = vmatpush1.msra.mxu0 %v656
      %1527 = vmatprep.mubr.f32.mxu0 %v1462
      %1528 = vmatmul.mubr.f32.gmra.mrb[0].mxu0 %v1461
      %v1529 = vpop.f32.mrb[0].mxu0
      %v1530 = vadd.f32 0.0, %v1529
      %v1531 = vpop.f32.mrb[0].mxu0
      %v1532 = vadd.f32 0.0, %v1531
      %1533 = vdwg.mxu0
      %v1534 = vmax.f32 %v1461, %v1530
      %v1535 = vmax.f32 %v1462, %v1532
      %1536 = vmatprep.subr.mxu0 %v749
      %1537 = vmatpush1.msra.mxu0 %v748
      %1538 = vmatprep.subr.mxu0 %v751
      %1539 = vmatpush1.msra.mxu0 %v750
      %1540 = vmatprep.subr.mxu0 %v753
      %1541 = vmatpush1.msra.mxu0 %v752
      %1542 = vmatprep.subr.mxu0 %v755
      %1543 = vmatpush1.msra.mxu0 %v754
      %1544 = vmatprep.subr.mxu0 %v757
      %1545 = vmatpush1.msra.mxu0 %v756
      %1546 = vmatprep.subr.mxu0 %v759
      %1547 = vmatpush1.msra.mxu0 %v758
      %1548 = vmatprep.subr.mxu0 %v761
      %1549 = vmatpush1.msra.mxu0 %v760
      %1550 = vmatprep.subr.mxu0 %v763
      %1551 = vmatpush1.msra.mxu0 %v762
      %1552 = vmatprep.subr.mxu0 %v765
      %1553 = vmatpush1.msra.mxu0 %v764
      %1554 = vmatprep.subr.mxu0 %v767
      %1555 = vmatpush1.msra.mxu0 %v766
      %1556 = vmatprep.subr.mxu0 %v769
      %1557 = vmatpush1.msra.mxu0 %v768
      %1558 = vmatprep.subr.mxu0 %v771
      %1559 = vmatpush1.msra.mxu0 %v770
      %1560 = vmatprep.subr.mxu0 %v773
      %1561 = vmatpush1.msra.mxu0 %v772
      %1562 = vmatprep.subr.mxu0 %v775
      %1563 = vmatpush1.msra.mxu0 %v774
      %1564 = vmatprep.subr.mxu0 %v777
      %1565 = vmatpush1.msra.mxu0 %v776
      %1566 = vmatprep.subr.mxu0 %v779
      %1567 = vmatpush1.msra.mxu0 %v778
      %1568 = vmatprep.subr.mxu0 %v781
      %1569 = vmatpush1.msra.mxu0 %v780
      %1570 = vmatprep.subr.mxu0 %v783
      %1571 = vmatpush1.msra.mxu0 %v782
      %1572 = vmatprep.subr.mxu0 %v785
      %1573 = vmatpush1.msra.mxu0 %v784
      %1574 = vmatprep.subr.mxu0 %v787
      %1575 = vmatpush1.msra.mxu0 %v786
      %1576 = vmatprep.subr.mxu0 %v789
      %1577 = vmatpush1.msra.mxu0 %v788
      %1578 = vmatprep.subr.mxu0 %v791
      %1579 = vmatpush1.msra.mxu0 %v790
      %1580 = vmatprep.subr.mxu0 %v793
      %1581 = vmatpush1.msra.mxu0 %v792
      %1582 = vmatprep.subr.mxu0 %v795
      %1583 = vmatpush1.msra.mxu0 %v794
      %1584 = vmatprep.subr.mxu0 %v797
      %1585 = vmatpush1.msra.mxu0 %v796
      %1586 = vmatprep.subr.mxu0 %v799
      %1587 = vmatpush1.msra.mxu0 %v798
      %1588 = vmatprep.subr.mxu0 %v801
      %1589 = vmatpush1.msra.mxu0 %v800
      %1590 = vmatprep.subr.mxu0 %v803
      %1591 = vmatpush1.msra.mxu0 %v802
      %1592 = vmatprep.subr.mxu0 %v805
      %1593 = vmatpush1.msra.mxu0 %v804
      %1594 = vmatprep.subr.mxu0 %v807
      %1595 = vmatpush1.msra.mxu0 %v806
      %1596 = vmatprep.subr.mxu0 %v809
      %1597 = vmatpush1.msra.mxu0 %v808
      %1598 = vmatprep.subr.mxu0 %v811
      %1599 = vmatpush1.msra.mxu0 %v810
      %1600 = vmatprep.mubr.f32.mxu0 %v1535
      %1601 = vmatmul.mubr.f32.gmra.mrb[0].mxu0 %v1534
      %v1602 = vpop.f32.mrb[0].mxu0
      %v1603 = vadd.f32 0.0, %v1602
      %v1604 = vpop.f32.mrb[0].mxu0
      %v1605 = vadd.f32 0.0, %v1604
      %1606 = vdwg.mxu0
      %v1607 = vmax.f32 %v1534, %v1603
      %v1608 = vmax.f32 %v1535, %v1605
      %1609 = vmatprep.subr.mxu0 %v903
      %1610 = vmatpush1.msra.mxu0 %v902
      %1611 = vmatprep.subr.mxu0 %v905
      %1612 = vmatpush1.msra.mxu0 %v904
      %1613 = vmatprep.subr.mxu0 %v907
      %1614 = vmatpush1.msra.mxu0 %v906
      %1615 = vmatprep.subr.mxu0 %v909
      %1616 = vmatpush1.msra.mxu0 %v908
      %1617 = vmatprep.subr.mxu0 %v911
      %1618 = vmatpush1.msra.mxu0 %v910
      %1619 = vmatprep.subr.mxu0 %v913
      %1620 = vmatpush1.msra.mxu0 %v912
      %1621 = vmatprep.subr.mxu0 %v915
      %1622 = vmatpush1.msra.mxu0 %v914
      %1623 = vmatprep.subr.mxu0 %v917
      %1624 = vmatpush1.msra.mxu0 %v916
      %1625 = vmatprep.subr.mxu0 %v919
      %1626 = vmatpush1.msra.mxu0 %v918
      %1627 = vmatprep.subr.mxu0 %v921
      %1628 = vmatpush1.msra.mxu0 %v920
      %1629 = vmatprep.subr.mxu0 %v923
      %1630 = vmatpush1.msra.mxu0 %v922
      %1631 = vmatprep.subr.mxu0 %v925
      %1632 = vmatpush1.msra.mxu0 %v924
      %1633 = vmatprep.subr.mxu0 %v927
      %1634 = vmatpush1.msra.mxu0 %v926
      %1635 = vmatprep.subr.mxu0 %v929
      %1636 = vmatpush1.msra.mxu0 %v928
      %1637 = vmatprep.subr.mxu0 %v931
      %1638 = vmatpush1.msra.mxu0 %v930
      %1639 = vmatprep.subr.mxu0 %v933
      %1640 = vmatpush1.msra.mxu0 %v932
      %1641 = vmatprep.subr.mxu0 %v935
      %1642 = vmatpush1.msra.mxu0 %v934
      %1643 = vmatprep.subr.mxu0 %v937
      %1644 = vmatpush1.msra.mxu0 %v936
      %1645 = vmatprep.subr.mxu0 %v939
      %1646 = vmatpush1.msra.mxu0 %v938
      %1647 = vmatprep.subr.mxu0 %v941
      %1648 = vmatpush1.msra.mxu0 %v940
      %1649 = vmatprep.subr.mxu0 %v943
      %1650 = vmatpush1.msra.mxu0 %v942
      %1651 = vmatprep.subr.mxu0 %v945
      %1652 = vmatpush1.msra.mxu0 %v944
      %1653 = vmatprep.subr.mxu0 %v947
      %1654 = vmatpush1.msra.mxu0 %v946
      %1655 = vmatprep.subr.mxu0 %v949
      %1656 = vmatpush1.msra.mxu0 %v948
      %1657 = vmatprep.subr.mxu0 %v951
      %1658 = vmatpush1.msra.mxu0 %v950
      %1659 = vmatprep.subr.mxu0 %v953
      %1660 = vmatpush1.msra.mxu0 %v952
      %1661 = vmatprep.subr.mxu0 %v955
      %1662 = vmatpush1.msra.mxu0 %v954
      %1663 = vmatprep.subr.mxu0 %v957
      %1664 = vmatpush1.msra.mxu0 %v956
      %1665 = vmatprep.subr.mxu0 %v959
      %1666 = vmatpush1.msra.mxu0 %v958
      %1667 = vmatprep.subr.mxu0 %v961
      %1668 = vmatpush1.msra.mxu0 %v960
      %1669 = vmatprep.subr.mxu0 %v963
      %1670 = vmatpush1.msra.mxu0 %v962
      %1671 = vmatprep.subr.mxu0 %v965
      %1672 = vmatpush1.msra.mxu0 %v964
      %1673 = vmatprep.mubr.f32.mxu0 %v1608
      %1674 = vmatmul.mubr.f32.gmra.mrb[0].mxu0 %v1607
      %v1675 = vpop.f32.mrb[0].mxu0
      %v1676 = vadd.f32 0.0, %v1675
      %v1677 = vpop.f32.mrb[0].mxu0
      %v1678 = vadd.f32 0.0, %v1677
      %1679 = vdwg.mxu0
      %v1680 = vmax.f32 %v1607, %v1676
      %v1681 = vmax.f32 %v1608, %v1678
      %1682 = vmatprep.subr.mxu0 %v1057
      %1683 = vmatpush1.msra.mxu0 %v1056
      %1684 = vmatprep.subr.mxu0 %v1059
      %1685 = vmatpush1.msra.mxu0 %v1058
      %1686 = vmatprep.subr.mxu0 %v1061
      %1687 = vmatpush1.msra.mxu0 %v1060
      %1688 = vmatprep.subr.mxu0 %v1063
      %1689 = vmatpush1.msra.mxu0 %v1062
      %1690 = vmatprep.subr.mxu0 %v1065
      %1691 = vmatpush1.msra.mxu0 %v1064
      %1692 = vmatprep.subr.mxu0 %v1067
      %1693 = vmatpush1.msra.mxu0 %v1066
      %1694 = vmatprep.subr.mxu0 %v1069
      %1695 = vmatpush1.msra.mxu0 %v1068
      %1696 = vmatprep.subr.mxu0 %v1071
      %1697 = vmatpush1.msra.mxu0 %v1070
      %1698 = vmatprep.subr.mxu0 %v1073
      %1699 = vmatpush1.msra.mxu0 %v1072
      %1700 = vmatprep.subr.mxu0 %v1075
      %1701 = vmatpush1.msra.mxu0 %v1074
      %1702 = vmatprep.subr.mxu0 %v1077
      %1703 = vmatpush1.msra.mxu0 %v1076
      %1704 = vmatprep.subr.mxu0 %v1079
      %1705 = vmatpush1.msra.mxu0 %v1078
      %1706 = vmatprep.subr.mxu0 %v1081
      %1707 = vmatpush1.msra.mxu0 %v1080
      %1708 = vmatprep.subr.mxu0 %v1083
      %1709 = vmatpush1.msra.mxu0 %v1082
      %1710 = vmatprep.subr.mxu0 %v1085
      %1711 = vmatpush1.msra.mxu0 %v1084
      %1712 = vmatprep.subr.mxu0 %v1087
      %1713 = vmatpush1.msra.mxu0 %v1086
      %1714 = vmatprep.subr.mxu0 %v1089
      %1715 = vmatpush1.msra.mxu0 %v1088
      %1716 = vmatprep.subr.mxu0 %v1091
      %1717 = vmatpush1.msra.mxu0 %v1090
      %1718 = vmatprep.subr.mxu0 %v1093
      %1719 = vmatpush1.msra.mxu0 %v1092
      %1720 = vmatprep.subr.mxu0 %v1095
      %1721 = vmatpush1.msra.mxu0 %v1094
      %1722 = vmatprep.subr.mxu0 %v1097
      %1723 = vmatpush1.msra.mxu0 %v1096
      %1724 = vmatprep.subr.mxu0 %v1099
      %1725 = vmatpush1.msra.mxu0 %v1098
      %1726 = vmatprep.subr.mxu0 %v1101
      %1727 = vmatpush1.msra.mxu0 %v1100
      %1728 = vmatprep.subr.mxu0 %v1103
      %1729 = vmatpush1.msra.mxu0 %v1102
      %1730 = vmatprep.subr.mxu0 %v1105
      %1731 = vmatpush1.msra.mxu0 %v1104
      %1732 = vmatprep.subr.mxu0 %v1107
      %1733 = vmatpush1.msra.mxu0 %v1106
      %1734 = vmatprep.subr.mxu0 %v1109
      %1735 = vmatpush1.msra.mxu0 %v1108
      %1736 = vmatprep.subr.mxu0 %v1111
      %1737 = vmatpush1.msra.mxu0 %v1110
      %1738 = vmatprep.subr.mxu0 %v1113
      %1739 = vmatpush1.msra.mxu0 %v1112
      %1740 = vmatprep.subr.mxu0 %v1115
      %1741 = vmatpush1.msra.mxu0 %v1114
      %1742 = vmatprep.subr.mxu0 %v1117
      %1743 = vmatpush1.msra.mxu0 %v1116
      %1744 = vmatprep.subr.mxu0 %v1119
      %1745 = vmatpush1.msra.mxu0 %v1118
      %1746 = vmatprep.mubr.f32.mxu0 %v1681
      %1747 = vmatmul.mubr.f32.gmra.mrb[0].mxu0 %v1680
      %v1748 = vpop.f32.mrb[0].mxu0
      %v1749 = vadd.f32 0.0, %v1748
      %v1750 = vpop.f32.mrb[0].mxu0
      %v1751 = vadd.f32 0.0, %v1750
      %1752 = vdwg.mxu0
      %v1753 = vmax.f32 %v1680, %v1749
      %v1754 = vmax.f32 %v1681, %v1751
      %v1755 = vld [vmem:[%s6] sm:$0xff]
      %v1756 = vld [vmem:[%s7] sm:$0xff]
      %1758 = vset.pattern.permute.xlu0 0
      %1759 = vperm.xlu0 %1758, %v1756
      %v1760 = vpop.permute.xlu0 %1759
      %vm1762 = vcmask 195584
      %v1764 = vsel %vm1762, %v1755, 0
      %1766 = vmatprep.subr.mxu0 %v1462
      %1767 = vmatpush1.msra.mxu0 %v1461
      %1768 = vmatprep.subr.mxu0 %v1608
      %1769 = vmatpush1.msra.mxu0 %v1607
      %1770 = vmatprep.subr.mxu0 %v1754
      %1771 = vmatpush1.msra.mxu0 %v1753
      %1772 = vmatprep.subr.mxu0 0.0
      %1773 = vmatpush1.msra.mxu0 0.0
      %1774 = vmatprep.subr.mxu0 0.0
      %1775 = vmatpush1.msra.mxu0 0.0
      %1776 = vmatprep.subr.mxu0 0.0
      %1777 = vmatpush1.msra.mxu0 0.0
      %1778 = vmatprep.subr.mxu0 0.0
      %1779 = vmatpush1.msra.mxu0 0.0
      %1780 = vmatprep.subr.mxu0 0.0
      %1781 = vmatpush1.msra.mxu0 0.0
      %1782 = vmatprep.subr.mxu0 0.0
      %1783 = vmatpush1.msra.mxu0 0.0
      %1784 = vmatprep.subr.mxu0 0.0
      %1785 = vmatpush1.msra.mxu0 0.0
      %1786 = vmatprep.subr.mxu0 0.0
      %1787 = vmatpush1.msra.mxu0 0.0
      %1788 = vmatprep.subr.mxu0 0.0
      %1789 = vmatpush1.msra.mxu0 0.0
      %1790 = vmatprep.subr.mxu0 0.0
      %1791 = vmatpush1.msra.mxu0 0.0
      %1792 = vmatprep.subr.mxu0 0.0
      %1793 = vmatpush1.msra.mxu0 0.0
      %1794 = vmatprep.subr.mxu0 0.0
      %1795 = vmatpush1.msra.mxu0 0.0
      %1796 = vmatprep.subr.mxu0 0.0
      %1797 = vmatpush1.msra.mxu0 0.0
      %1798 = vmatprep.subr.mxu0 0.0
      %1799 = vmatpush1.msra.mxu0 0.0
      %1800 = vmatprep.subr.mxu0 0.0
      %1801 = vmatpush1.msra.mxu0 0.0
      %1802 = vmatprep.subr.mxu0 0.0
      %1803 = vmatpush1.msra.mxu0 0.0
      %1804 = vmatprep.subr.mxu0 0.0
      %1805 = vmatpush1.msra.mxu0 0.0
      %1806 = vmatprep.subr.mxu0 0.0
      %1807 = vmatpush1.msra.mxu0 0.0
      %1808 = vmatprep.subr.mxu0 0.0
      %1809 = vmatpush1.msra.mxu0 0.0
      %1810 = vmatprep.subr.mxu0 0.0
      %1811 = vmatpush1.msra.mxu0 0.0
      %1812 = vmatprep.subr.mxu0 0.0
      %1813 = vmatpush1.msra.mxu0 0.0
      %1814 = vmatprep.subr.mxu0 0.0
      %1815 = vmatpush1.msra.mxu0 0.0
      %1816 = vmatprep.subr.mxu0 0.0
      %1817 = vmatpush1.msra.mxu0 0.0
      %1818 = vmatprep.subr.mxu0 0.0
      %1819 = vmatpush1.msra.mxu0 0.0
      %1820 = vmatprep.subr.mxu0 0.0
      %1821 = vmatpush1.msra.mxu0 0.0
      %1822 = vmatprep.subr.mxu0 0.0
      %1823 = vmatpush1.msra.mxu0 0.0
      %1824 = vmatprep.subr.mxu0 0.0
      %1825 = vmatpush1.msra.mxu0 0.0
      %1826 = vmatprep.subr.mxu0 0.0
      %1827 = vmatpush1.msra.mxu0 0.0
      %1828 = vmatprep.subr.mxu0 0.0
      %1829 = vmatpush1.msra.mxu0 0.0
      %1830 = vmatprep.mubr.f32.mxu0 0.0
      %1831 = vmatmul.mubr.f32.gmra.mrb[0].mxu0 %v1764
      %v1832 = vpop.f32.mrb[0].mxu0
      %v1833 = vadd.f32 %v1760, %v1832
      %v1834 = vpop.f32.mrb[0].mxu0
      %v1835 = vadd.f32 %v1760, %v1834
      %1836 = vdwg.mxu0
      %v1837 = vmax.f32 %v1833, 0.0
      %v1838 = vmax.f32 %v1835, 0.0
      %v1839 = vsub.f32 %v1837, %v1323
      %v1840 = vsub.f32 %v1838, %v1324
      %v1841 = vsub.f32 %v1837, %v1325
      %v1842 = vsub.f32 %v1838, %v1326
      %s1843 = scalar_lea.vmem %s8, 16
      %v1844 = vld [vmem:[%s1843] sm:$0xff]
      %v1845 = vld [vmem:[%s1843 + $0x8] sm:$0xff]
      %s1846 = scalar_lea.vmem %s9, 16
      %v1847 = vld [vmem:[%s1846] sm:$0xff]
      %v1848 = vld [vmem:[%s1846 + $0x8] sm:$0xff]
      %1850 = vset.pattern.permute.xlu0 0
      %1851 = vperm.xlu0 %1850, %v1847
      %v1852 = vpop.permute.xlu0 %1851
      %1855 = vset.pattern.permute.xlu0 0
      %1856 = vperm.xlu0 %1855, %v1848
      %v1857 = vpop.permute.xlu0 %1856
      %v1860 = vsel %vm1347, %v1844, 0
      %v1863 = vsel %vm1347, %v1845, 0
      %1865 = vmatprep.subr.mxu0 %v1840
      %1866 = vmatpush1.msra.mxu0 %v1839
      %1867 = vmatprep.subr.mxu0 %v1842
      %1868 = vmatpush1.msra.mxu0 %v1841
      %1869 = vmatprep.subr.mxu0 0.0
      %1870 = vmatpush1.msra.mxu0 0.0
      %1871 = vmatprep.subr.mxu0 0.0
      %1872 = vmatpush1.msra.mxu0 0.0
      %1873 = vmatprep.subr.mxu0 0.0
      %1874 = vmatpush1.msra.mxu0 0.0
      %1875 = vmatprep.subr.mxu0 0.0
      %1876 = vmatpush1.msra.mxu0 0.0
      %1877 = vmatprep.subr.mxu0 0.0
      %1878 = vmatpush1.msra.mxu0 0.0
      %1879 = vmatprep.subr.mxu0 0.0
      %1880 = vmatpush1.msra.mxu0 0.0
      %1881 = vmatprep.subr.mxu0 0.0
      %1882 = vmatpush1.msra.mxu0 0.0
      %1883 = vmatprep.subr.mxu0 0.0
      %1884 = vmatpush1.msra.mxu0 0.0
      %1885 = vmatprep.subr.mxu0 0.0
      %1886 = vmatpush1.msra.mxu0 0.0
      %1887 = vmatprep.subr.mxu0 0.0
      %1888 = vmatpush1.msra.mxu0 0.0
      %1889 = vmatprep.subr.mxu0 0.0
      %1890 = vmatpush1.msra.mxu0 0.0
      %1891 = vmatprep.subr.mxu0 0.0
      %1892 = vmatpush1.msra.mxu0 0.0
      %1893 = vmatprep.subr.mxu0 0.0
      %1894 = vmatpush1.msra.mxu0 0.0
      %1895 = vmatprep.subr.mxu0 0.0
      %1896 = vmatpush1.msra.mxu0 0.0
      %1897 = vmatprep.subr.mxu0 0.0
      %1898 = vmatpush1.msra.mxu0 0.0
      %1899 = vmatprep.subr.mxu0 0.0
      %1900 = vmatpush1.msra.mxu0 0.0
      %1901 = vmatprep.subr.mxu0 0.0
      %1902 = vmatpush1.msra.mxu0 0.0
      %1903 = vmatprep.subr.mxu0 0.0
      %1904 = vmatpush1.msra.mxu0 0.0
      %1905 = vmatprep.subr.mxu0 0.0
      %1906 = vmatpush1.msra.mxu0 0.0
      %1907 = vmatprep.subr.mxu0 0.0
      %1908 = vmatpush1.msra.mxu0 0.0
      %1909 = vmatprep.subr.mxu0 0.0
      %1910 = vmatpush1.msra.mxu0 0.0
      %1911 = vmatprep.subr.mxu0 0.0
      %1912 = vmatpush1.msra.mxu0 0.0
      %1913 = vmatprep.subr.mxu0 0.0
      %1914 = vmatpush1.msra.mxu0 0.0
      %1915 = vmatprep.subr.mxu0 0.0
      %1916 = vmatpush1.msra.mxu0 0.0
      %1917 = vmatprep.subr.mxu0 0.0
      %1918 = vmatpush1.msra.mxu0 0.0
      %1919 = vmatprep.subr.mxu0 0.0
      %1920 = vmatpush1.msra.mxu0 0.0
      %1921 = vmatprep.subr.mxu0 0.0
      %1922 = vmatpush1.msra.mxu0 0.0
      %1923 = vmatprep.subr.mxu0 0.0
      %1924 = vmatpush1.msra.mxu0 0.0
      %1925 = vmatprep.subr.mxu0 0.0
      %1926 = vmatpush1.msra.mxu0 0.0
      %1927 = vmatprep.subr.mxu0 0.0
      %1928 = vmatpush1.msra.mxu0 0.0
      %1929 = vmatprep.mubr.f32.mxu0 0.0
      %1930 = vmatmul.mubr.f32.gmra.mrb[0].mxu0 %v1860
      %v1931 = vpop.f32.mrb[0].mxu0
      %v1932 = vadd.f32 %v1852, %v1931
      %v1933 = vpop.f32.mrb[0].mxu0
      %v1934 = vadd.f32 %v1852, %v1933
      %1935 = vmatprep.mubr.f32.mxu0 0.0
      %1936 = vmatmul.mubr.f32.gmra.mrb[0].mxu0 %v1863
      %v1937 = vpop.f32.mrb[0].mxu0
      %v1938 = vadd.f32 %v1857, %v1937
      %v1939 = vpop.f32.mrb[0].mxu0
      %v1940 = vadd.f32 %v1857, %v1939
      %1941 = vdwg.mxu0
      %v1942 = vsub.f32 0.0, %v1932
      %v1943 = vsub.f32 0.0, %v1934
      %v1944 = vsub.f32 0.0, %v1938
      %v1945 = vsub.f32 0.0, %v1940
      %v1946 = vmul.f32 %v1942, 1.442695
      %v1947 = vpow.pop %v1946
      %v1948 = vmul.f32 %v1943, 1.442695
      %v1949 = vpow.pop %v1948
      %v1950 = vmul.f32 %v1944, 1.442695
      %v1951 = vpow.pop %v1950
      %v1952 = vmul.f32 %v1945, 1.442695
      %v1953 = vpow.pop %v1952
      %v1954 = vadd.f32 %v1947, 1.0
      %v1955 = vadd.f32 %v1949, 1.0
      %v1956 = vadd.f32 %v1951, 1.0
      %v1957 = vadd.f32 %v1953, 1.0
      %v1958 = vrcp.pop %v1954
      %v1959 = vmul.f32 1.0, %v1958
      %v1960 = vrcp.pop %v1955
      %v1961 = vmul.f32 1.0, %v1960
      %v1962 = vrcp.pop %v1956
      %v1963 = vmul.f32 1.0, %v1962
      %v1964 = vrcp.pop %v1957
      %v1965 = vmul.f32 1.0, %v1964
      %v1966 = vmul.f32 %v1839, %v1959
      %v1967 = vmul.f32 %v1840, %v1961
      %v1968 = vadd.f32 %v588, %v1966
      %v1969 = vadd.f32 %v589, %v1967
      %1970 = vst [vmem:[%s428] sm:$0xff] %v1968
      %1971 = vst [vmem:[%s428 + $0x8] sm:$0xff] %v1969
      %v1972 = vmul.f32 %v1841, %v1963
      %v1973 = vmul.f32 %v1842, %v1965
      %v1974 = vadd.f32 %v590, %v1972
      %v1975 = vadd.f32 %v591, %v1973
      %1976 = vst [vmem:[%s433] sm:$0xff] %v1974
      %1977 = vst [vmem:[%s433 + $0x8] sm:$0xff] %v1975
      %1978 = vst [vmem:[%s438] sm:$0xff] %v1461
      %1979 = vst [vmem:[%s438 + $0x8] sm:$0xff] %v1462
      %p1980 = scmp.lt.s32.totalorder %s24, 1
      %s1981 = scalar_select %p1980, %s24, 1
      %s1982 = smul.addr %s1981, 2
      %s1983 = smul.addr %s1982, 8
      %s1984 = scalar_lea.vmem %s10, %s1983
      %p1985 = scmp.lt.s32.totalorder %s24, 1
      %s1986 = scalar_select %p1985, %s24, 1
      %s1987 = smul.addr %s1986, 2
      %s1988 = smul.addr %s1987, 8
      %s1989 = scalar_lea.vmem %s11, %s1988
      %p1990 = scmp.lt.s32.totalorder %s24, 1
      %s1991 = scalar_select %p1990, %s24, 1
      %s1992 = smul.addr %s1991, 2
      %s1993 = smul.addr %s1992, 8
      %s1994 = scalar_lea.vmem %s12, %s1993
      // Predicated region
      $region61: #{block_forward.1} parent=59 // pred_check
        %p1995 = pneg %p257
      $region62: #{block_forward.1} parent=59 // pred_check_branch
        %1997 = sbr.rel (%p1995) target = $region64
      $region63: #{block_forward.1} parent=59 // pred_region
        _
      $region64: #{block_forward.1} parent=59 // pred_fallthru
        _
      // Predicated region
      $region65: #{block_forward.1} parent=59 // pred_check
        %p1998 = pneg %p283
      $region66: #{block_forward.1} parent=59 // pred_check_branch
        %2000 = sbr.rel (%p1998) target = $region68
      $region67: #{block_forward.1} parent=59 // pred_region
        _
      $region68: #{block_forward.1} parent=59 // pred_fallthru
        _
      // Predicated region
      $region69: #{block_forward.1} parent=59 // pred_check
        %p2001 = pneg %p309
      $region70: #{block_forward.1} parent=59 // pred_check_branch
        %2003 = sbr.rel (%p2001) target = $region72
      $region71: #{block_forward.1} parent=59 // pred_region
        _
      $region72: #{block_forward.1} parent=59 // pred_fallthru
        _
    $region60: #{block_forward.1} parent=5 // pred_fallthru
      _
    %p2004 = scmp.le.s32.totalorder 2, %s19
    // Predicated region
    $region73: #{block_forward.1} parent=5 // pred_check
      %p2005 = pneg %p2004
    $region74: #{block_forward.1} parent=5 // pred_check_branch
      %2007 = sbr.rel (%p2005) target = $region76
    $region75: #{block_forward.1} parent=5 // pred_region
      %s2008 = ssub.s32 %s19, 2
      // Predicated region
      $region77: #{block_forward.1} parent=75 // pred_check
        %p2009 = pneg %p263
      $region78: #{block_forward.1} parent=75 // pred_check_branch
        %2011 = sbr.rel (%p2009) target = $region80
      $region79: #{block_forward.1} parent=75 // pred_region
        %p2012 = scmp.lt.s32.totalorder %s25, 1
        %s2013 = scalar_select %p2012, %s25, 1
        %s2014 = smul.addr %s2013, 2
        %s2015 = smul.addr %s2014, 8
        %s2016 = scalar_lea.vmem %s10, %s2015
      $region80: #{block_forward.1} parent=75 // pred_fallthru
        _
      // Predicated region
      $region81: #{block_forward.1} parent=75 // pred_check
        %p2017 = pneg %p289
      $region82: #{block_forward.1} parent=75 // pred_check_branch
        %2019 = sbr.rel (%p2017) target = $region84
      $region83: #{block_forward.1} parent=75 // pred_region
        %p2020 = scmp.lt.s32.totalorder %s25, 1
        %s2021 = scalar_select %p2020, %s25, 1
        %s2022 = smul.addr %s2021, 2
        %s2023 = smul.addr %s2022, 8
        %s2024 = scalar_lea.vmem %s11, %s2023
      $region84: #{block_forward.1} parent=75 // pred_fallthru
        _
      // Predicated region
      $region85: #{block_forward.1} parent=75 // pred_check
        %p2025 = pneg %p315
      $region86: #{block_forward.1} parent=75 // pred_check_branch
        %2027 = sbr.rel (%p2025) target = $region88
      $region87: #{block_forward.1} parent=75 // pred_region
        %p2028 = scmp.lt.s32.totalorder %s25, 1
        %s2029 = scalar_select %p2028, %s25, 1
        %s2030 = smul.addr %s2029, 2
        %s2031 = smul.addr %s2030, 8
        %s2032 = scalar_lea.vmem %s12, %s2031
      $region88: #{block_forward.1} parent=75 // pred_fallthru
        _
    $region76: #{block_forward.1} parent=5 // pred_fallthru
      _
  $region6: #{block_forward.1} parent=0 // loop_footer
    %s23 = sadd.s32 1, %s19
  $region7: #{block_forward.1} parent=0 // loop_footer_branch
    %18 = sbr.rel target = $region3
  $region8: #{block_forward.1} parent=0 // loop_exit
    _

</llo_original>
